<compile_context>
chip_gen: v7x
topology: tpu7x:2x2x1
jax: 0.10.0
libtpu: 0.0.40
codegen_flags: <defaults>
</compile_context>

<pallas_src>
import functools

import jax
import jax.numpy as jnp
from jax.experimental import pallas as pl
from jax.experimental.pallas import tpu as pltpu


def _distill_text_kernel(x_ref, w_ref, scale_ref, b_ref, t_ref, out_ref, *,
                         inv_n):
    # x_ref:     [B, D_in]   f32   (BERT pooler_output)
    # w_ref:     [D_in, bn]  int8  (column slab of the quantized Linear weight)
    # scale_ref: [1, bn]     f32   (per-column dequant scale)
    # b_ref:     [1, bn]     f32   (bias slab)
    # t_ref:     [B, bn]     f32   (chnclip text target slab)
    # out_ref:   [8, 128]    f32   (lane-dense tile broadcast with this
    #                               block's SSE * 1/n contribution)
    x_bf16 = x_ref[...].astype(jnp.bfloat16)          # activation quant (bf16)
    w_bf16 = w_ref[...].astype(jnp.bfloat16)          # int8 values exact in bf16
    acc = jnp.dot(x_bf16, w_bf16,                      # MXU, f32 accumulation
                  preferred_element_type=jnp.float32)
    pred = acc * scale_ref[...] + b_ref[...]           # dequant AFTER the MXU
    diff = pred - t_ref[...]
    sse = jnp.sum(diff * diff)                         # f32 partial sum of sq.
    out_ref[...] = jnp.full((8, 128), sse * inv_n, dtype=jnp.float32)


def _default_num_out_blocks():
    """1 weight slab per TensorCore: 1 on v5e/v6e, 2 on v7x."""
    try:
        kind = jax.devices()[0].device_kind.lower()
    except Exception:
        return 1
    return 2 if "v7" in kind else 1


def quantize_weight_int8(weight):
    """Per-column symmetric int8 quantization of a [D_in, D_out] weight."""
    amax = jnp.max(jnp.abs(weight), axis=0)
    scale = jnp.maximum(amax, 1e-8) / 127.0            # [D_out] f32
    w_q = jnp.clip(jnp.round(weight / scale), -127, 127).astype(jnp.int8)
    return w_q, scale


def distillation_text_loss(pooler_output, w_int8, w_scale, bias, target, *,
                           num_out_blocks=None):
    """Fused int8-weight Linear + MSELoss (mean reduction). Returns scalar f32.

    w_int8:  [D_in, D_out] int8 (per-column quantized weight)
    w_scale: [D_out]       f32  (per-column dequant scale)
    """
    if num_out_blocks is None:
        num_out_blocks = _default_num_out_blocks()

    B, D_in = pooler_output.shape
    D_out = w_int8.shape[1]
    assert w_int8.shape == (D_in, D_out)
    assert target.shape == (B, D_out)
    assert D_out % num_out_blocks == 0
    bn = D_out // num_out_blocks
    # (8,128) lane constraint on the W/scale/bias/target column blocks; B stays
    # the full batch dimension (full-extent block, so <8 sublanes is fine).
    assert bn % 128 == 0, "column block must be a multiple of 128 lanes"

    inv_n = 1.0 / float(B * D_out)                      # compile-time constant
    scale2d = w_scale.reshape(1, D_out).astype(jnp.float32)
    bias2d = bias.reshape(1, D_out).astype(jnp.float32)

    kernel = functools.partial(_distill_text_kernel, inv_n=inv_n)

    partials = pl.pallas_call(
        kernel,
        out_shape=jax.ShapeDtypeStruct((num_out_blocks * 8, 128), jnp.float32),
        grid=(num_out_blocks,),
        in_specs=[
            pl.BlockSpec((B, D_in), lambda j: (0, 0)),    # x: full block
            pl.BlockSpec((D_in, bn), lambda j: (0, j)),   # W column slab (int8)
            pl.BlockSpec((1, bn), lambda j: (0, j)),      # per-column scale
            pl.BlockSpec((1, bn), lambda j: (0, j)),      # bias slab
            pl.BlockSpec((B, bn), lambda j: (0, j)),      # target slab
        ],
        out_specs=pl.BlockSpec((8, 128), lambda j: (j, 0)),
        compiler_params=pltpu.CompilerParams(
            dimension_semantics=("parallel",)),           # v7x: 1 slab per TC
    )(pooler_output, w_int8, scale2d, bias2d, target)

    # Each tile already carries its block's (SSE * 1/n); combine with static
    # scalar loads (no strided gather / extra reduction fusion).
    loss = partials[0, 0]
    for j in range(1, num_out_blocks):
        loss = loss + partials[8 * j, 0]
    return loss


def reference_loss(pooler_output, weight, bias, target):
    pred = pooler_output @ weight + bias
    return jnp.mean((pred - target) ** 2)


if __name__ == "__main__":
    # Shapes implied by the module: test_tensor_dim=768, chnclip_text_dim=1024.
    B = 2
    D_IN = 768     # test_tensor_dim
    D_OUT = 1024   # chnclip_text_dim

    key = jax.random.PRNGKey(0)
    k_x, k_w, k_b, k_t = jax.random.split(key, 4)

    # Deterministic synthetic inputs/parameters (nn.Linear(768, 1024, bias)).
    pooler_output = jax.random.normal(k_x, (B, D_IN), dtype=jnp.float32)
    weight = jax.random.normal(k_w, (D_IN, D_OUT), dtype=jnp.float32) * 0.02
    bias = jax.random.normal(k_b, (D_OUT,), dtype=jnp.float32) * 0.01
    chnclip_text = jax.random.normal(k_t, (B, D_OUT), dtype=jnp.float32)

    # int8 weight + per-column scale: halves the (dominant) weight DMA vs bf16.
    w_int8, w_scale = quantize_weight_int8(weight)

    num_out_blocks = _default_num_out_blocks()
    loss_fn = jax.jit(functools.partial(distillation_text_loss,
                                        num_out_blocks=num_out_blocks))
    loss = jax.block_until_ready(
        loss_fn(pooler_output, w_int8, w_scale, bias, chnclip_text))

    # Reference matching the kernel's quantization (tight tolerance).
    w_deq = w_int8.astype(jnp.float32) * w_scale
    x_bf16 = pooler_output.astype(jnp.bfloat16).astype(jnp.float32)
    ref_q = jax.block_until_ready(
        reference_loss(x_bf16, w_deq, bias, chnclip_text))
    assert jnp.allclose(loss, ref_q, rtol=1e-3, atol=1e-3), (loss, ref_q)

    # Full-precision reference (loose tolerance — int8 weight / bf16 act quant).
    ref_f32 = jax.block_until_ready(
        reference_loss(pooler_output, weight, bias, chnclip_text))
    assert jnp.allclose(loss, ref_f32, rtol=2e-2, atol=2e-2), (loss, ref_f32)

    print("KERNEL_OK")
</pallas_src>

<mosaic_0001>
module attributes {stable_mosaic.version = 11 : i64} {
  func.func @_distill_text_kernel(%arg0: i32, %arg1: memref<2x768xf32, #tpu.memory_space<vmem>>, %arg2: memref<768x1024xi8, #tpu.memory_space<vmem>>, %arg3: memref<1x1024xf32, #tpu.memory_space<vmem>>, %arg4: memref<1x1024xf32, #tpu.memory_space<vmem>>, %arg5: memref<2x1024xf32, #tpu.memory_space<vmem>>, %arg6: memref<8x128xf32, #tpu.memory_space<vmem>>) attributes {dimension_semantics = [#tpu.dimension_semantics<parallel>], iteration_bounds = array<i64: 1>, scalar_prefetch = 0 : i64, scratch_operands = 0 : i64, tpu.core_type = #tpu.core_type<tc>, window_params = [{pipeline_mode = #tpu.pipeline_mode<synchronous>, transform_indices = @transform_0, window_bounds = array<i64: 2, 768>}, {transform_indices = @transform_1, window_bounds = array<i64: 768, 1024>}, {transform_indices = @transform_2, window_bounds = array<i64: 1, 1024>}, {transform_indices = @transform_3, window_bounds = array<i64: 1, 1024>}, {transform_indices = @transform_4, window_bounds = array<i64: 2, 1024>}, {transform_indices = @transform_5, window_bounds = array<i64: 8, 128>}]} {
    %c0 = arith.constant 0 : index
    %c0_0 = arith.constant 0 : index
    %0 = vector.load %arg1[%c0, %c0_0] : memref<2x768xf32, #tpu.memory_space<vmem>>, vector<2x768xf32>
    %1 = arith.truncf %0 : vector<2x768xf32> to vector<2x768xbf16>
    %c0_1 = arith.constant 0 : index
    %c0_2 = arith.constant 0 : index
    %2 = vector.load %arg2[%c0_1, %c0_2] : memref<768x1024xi8, #tpu.memory_space<vmem>>, vector<768x1024xi8>
    %3 = arith.sitofp %2 : vector<768x1024xi8> to vector<768x1024xbf16>
    %cst = arith.constant dense<0.000000e+00> : vector<2x1024xf32>
    %4 = tpu.matmul %1, %3, %cst {dimension_numbers = #tpu.dot_dimension_numbers<[1], [0], [0], [1], [0, 0, 1, 1], [], []>} : vector<2x768xbf16>, vector<768x1024xbf16>, vector<2x1024xf32> -> vector<2x1024xf32>
    %c0_3 = arith.constant 0 : index
    %c0_4 = arith.constant 0 : index
    %5 = vector.load %arg3[%c0_3, %c0_4] : memref<1x1024xf32, #tpu.memory_space<vmem>>, vector<1x1024xf32>
    %6 = vector.broadcast %5 : vector<1x1024xf32> to vector<2x1024xf32>
    %7 = arith.mulf %4, %6 : vector<2x1024xf32>
    %c0_5 = arith.constant 0 : index
    %c0_6 = arith.constant 0 : index
    %8 = vector.load %arg4[%c0_5, %c0_6] : memref<1x1024xf32, #tpu.memory_space<vmem>>, vector<1x1024xf32>
    %9 = vector.broadcast %8 : vector<1x1024xf32> to vector<2x1024xf32>
    %10 = arith.addf %7, %9 : vector<2x1024xf32>
    %c0_7 = arith.constant 0 : index
    %c0_8 = arith.constant 0 : index
    %11 = vector.load %arg5[%c0_7, %c0_8] : memref<2x1024xf32, #tpu.memory_space<vmem>>, vector<2x1024xf32>
    %12 = arith.subf %10, %11 : vector<2x1024xf32>
    %13 = arith.mulf %12, %12 : vector<2x1024xf32>
    %14 = vector.shape_cast %13 : vector<2x1024xf32> to vector<1x2x1024xf32>
    %cst_9 = arith.constant dense<0.000000e+00> : vector<1xf32>
    %15 = vector.multi_reduction <add>, %14, %cst_9 [1, 2] : vector<1x2x1024xf32> to vector<1xf32>
    %16 = vector.shape_cast %15 : vector<1xf32> to vector<1x1x1xf32>
    %17 = vector.extract %16[0, 0, 0] : f32 from vector<1x1x1xf32>
    %cst_10 = arith.constant 4.8828125E-4 : f32
    %18 = arith.mulf %17, %cst_10 : f32
    %19 = vector.broadcast %18 : f32 to vector<8x128xf32>
    %c0_11 = arith.constant 0 : index
    %c0_12 = arith.constant 0 : index
    %20 = vector.load %arg6[%c0_11, %c0_12] : memref<8x128xf32, #tpu.memory_space<vmem>>, vector<8x128xf32>
    tpu.vector_store %arg6[%c0_11, %c0_12], %19 {strides = array<i32>} : memref<8x128xf32, #tpu.memory_space<vmem>>, vector<8x128xf32>,
    return
  }
  func.func @transform_0(%arg0: i32) -> (i32, i32) {
    %c0_i32 = arith.constant 0 : i32
    %c0_i32_0 = arith.constant 0 : i32
    %c0_i32_1 = arith.constant 0 : i32
    return %c0_i32, %c0_i32_0 : i32, i32
  }
  func.func @transform_1(%arg0: i32) -> (i32, i32) {
    %c0_i32 = arith.constant 0 : i32
    %c0_i32_0 = arith.constant 0 : i32
    return %c0_i32, %arg0 : i32, i32
  }
  func.func @transform_2(%arg0: i32) -> (i32, i32) {
    %c0_i32 = arith.constant 0 : i32
    %c0_i32_0 = arith.constant 0 : i32
    return %c0_i32, %arg0 : i32, i32
  }
  func.func @transform_3(%arg0: i32) -> (i32, i32) {
    %c0_i32 = arith.constant 0 : i32
    %c0_i32_0 = arith.constant 0 : i32
    return %c0_i32, %arg0 : i32, i32
  }
  func.func @transform_4(%arg0: i32) -> (i32, i32) {
    %c0_i32 = arith.constant 0 : i32
    %c0_i32_0 = arith.constant 0 : i32
    return %c0_i32, %arg0 : i32, i32
  }
  func.func @transform_5(%arg0: i32) -> (i32, i32) {
    %c0_i32 = arith.constant 0 : i32
    %c0_i32_0 = arith.constant 0 : i32
    return %arg0, %c0_i32 : i32, i32
  }
}

</mosaic_0001>

<llo_original>
// kernel: distillation_text_loss.1
$region0: #{distillation_text_loss.1}
  #allocation0 [shape = 'u32[]', space=smem, size = 0x4, offset = 0x4, fixed_abs, tag = 'smem constant byte address 0x4 - core index']
  #allocation1 [shape = 'u32[144,128]{1,0:T(1,128)}', space=vmem, size = 0x12000, scoped, tag = 'internal scratch']
  %s0 = inlined_call_operand.hbm [shape: f32[2,768], index: 0, kind: input, shape index: {}]
  %s1 = inlined_call_operand.hbm [shape: s8[768,1024], index: 1, kind: input, shape index: {}]
  %s2 = inlined_call_operand.hbm [shape: f32[1,1024], index: 2, kind: input, shape index: {}]
  %s3 = inlined_call_operand.hbm [shape: f32[1,1024], index: 3, kind: input, shape index: {}]
  %s4 = inlined_call_operand.vmem [shape: f32[2,1024], index: 4, kind: input, shape index: {}]
  %s5 = inlined_call_operand.vmem [shape: f32[8,128], index: 5, kind: output, shape index: {}]
  %s6 = sld [smem:[#allocation0]]
  $region46: #{distillation_text_loss.1} parent=0
    _
  %s8 = ssub.s32 1, %s6
  %s9 = scalar_select 0, %s8, %s6
  $region1: #{distillation_text_loss.1} parent=0
    #allocation2 [shape = 'u8[6144]{0}', space=vmem, size = 0x1800, scoped, tag = 'input window, operand 0, single buffered']
    #allocation3 [shape = 's32[1]{0}', space=sflag, size = 0x4, scoped, tag = 'scoped memory for distillation_text_loss.1']
    #allocation4 [shape = 'u8[786432]{0}', space=vmem, size = 0xc0000, scoped, tag = 'input window, operand 1, single buffered']
    #allocation5 [shape = 's32[1]{0}', space=sflag, size = 0x4, scoped, tag = 'scoped memory for distillation_text_loss.1']
    #allocation6 [shape = 'u8[4096]{0}', space=vmem, size = 0x1000, scoped, tag = 'input window, operand 2, single buffered']
    #allocation7 [shape = 'u8[4096]{0}', space=vmem, size = 0x1000, scoped, tag = 'input window, operand 3, single buffered']
    #allocation8 [shape = 's32[1]{0}', space=sflag, size = 0x4, scoped, tag = 'scoped memory for distillation_text_loss.1']
    %10 = vsyncpa [#allocation3], 0
    %11 = vsyncpa [#allocation5], 0
    %12 = vsyncpa [#allocation8], 0
    // Predicated region
    $region2: #{distillation_text_loss.1} parent=1 // pred_check
      _
    $region3: #{distillation_text_loss.1} parent=1 // pred_check_branch
      %14 = sbr.rel (0) target = $region5
    $region4: #{distillation_text_loss.1} parent=1 // pred_region
      %s16 = ssub.s32 192, 192
      %17 = vsyncadd [#allocation3], %s16
      %s19 = sshll.u32 [#allocation2], 4
      %s20 = int_to_ptr.vmem [resolvable:$true] %s19
      %22 = dma.hbm_to_vmem [thread:$0]  %s0, 192, %s20, [#allocation3]
    $region5: #{distillation_text_loss.1} parent=1 // pred_fallthru
      _
    // Predicated region
    $region6: #{distillation_text_loss.1} parent=1 // pred_check
      _
    $region7: #{distillation_text_loss.1} parent=1 // pred_check_branch
      %24 = sbr.rel (0) target = $region9
    $region8: #{distillation_text_loss.1} parent=1 // pred_region
      %s26 = ssub.s32 24576, 24576
      %27 = vsyncadd [#allocation5], %s26
      %s28 = sshll.u32 [#allocation4], 4
      %s29 = int_to_ptr.vmem [resolvable:$true] %s28
      %34 = dma.hbm_to_vmem [thread:$0]  %s1, 24576, %s29, [#allocation5], 1024, 1024, 64
    $region9: #{distillation_text_loss.1} parent=1 // pred_fallthru
      _
    // Predicated region
    $region10: #{distillation_text_loss.1} parent=1 // pred_check
      _
    $region11: #{distillation_text_loss.1} parent=1 // pred_check_branch
      %36 = sbr.rel (0) target = $region13
    $region12: #{distillation_text_loss.1} parent=1 // pred_region
      %s38 = ssub.s32 128, 128
      %39 = vsyncadd [#allocation5], %s38
      %s41 = sshll.u32 [#allocation6], 4
      %s42 = int_to_ptr.vmem [resolvable:$true] %s41
      %44 = dma.hbm_to_vmem [thread:$0]  %s2, 128, %s42, [#allocation5]
    $region13: #{distillation_text_loss.1} parent=1 // pred_fallthru
      _
    // Predicated region
    $region14: #{distillation_text_loss.1} parent=1 // pred_check
      _
    $region15: #{distillation_text_loss.1} parent=1 // pred_check_branch
      %46 = sbr.rel (0) target = $region17
    $region16: #{distillation_text_loss.1} parent=1 // pred_region
      %s48 = ssub.s32 128, 128
      %49 = vsyncadd [#allocation8], %s48
      %s51 = sshll.u32 [#allocation7], 4
      %s52 = int_to_ptr.vmem [resolvable:$true] %s51
      %54 = dma.hbm_to_vmem [thread:$0]  %s3, 128, %s52, [#allocation8]
    $region17: #{distillation_text_loss.1} parent=1 // pred_fallthru
      _
    // Predicated region
    $region18: #{distillation_text_loss.1} parent=1 // pred_check
      _
    $region19: #{distillation_text_loss.1} parent=1 // pred_check_branch
      %56 = sbr.rel (0) target = $region21
    $region20: #{distillation_text_loss.1} parent=1 // pred_region
      _
    $region21: #{distillation_text_loss.1} parent=1 // pred_fallthru
      _
    // Predicated region
    $region22: #{distillation_text_loss.1} parent=1 // pred_check
      _
    $region23: #{distillation_text_loss.1} parent=1 // pred_check_branch
      %58 = sbr.rel (0) target = $region25
    $region24: #{distillation_text_loss.1} parent=1 // pred_region
      %59 = dma.done [#allocation3], 192
    $region25: #{distillation_text_loss.1} parent=1 // pred_fallthru
      _
    // Predicated region
    $region26: #{distillation_text_loss.1} parent=1 // pred_check
      _
    $region27: #{distillation_text_loss.1} parent=1 // pred_check_branch
      %61 = sbr.rel (0) target = $region29
    $region28: #{distillation_text_loss.1} parent=1 // pred_region
      %62 = dma.done [#allocation5], 24576
    $region29: #{distillation_text_loss.1} parent=1 // pred_fallthru
      _
    // Predicated region
    $region30: #{distillation_text_loss.1} parent=1 // pred_check
      _
    $region31: #{distillation_text_loss.1} parent=1 // pred_check_branch
      %64 = sbr.rel (0) target = $region33
    $region32: #{distillation_text_loss.1} parent=1 // pred_region
      %65 = dma.done [#allocation5], 128
    $region33: #{distillation_text_loss.1} parent=1 // pred_fallthru
      _
    // Predicated region
    $region34: #{distillation_text_loss.1} parent=1 // pred_check
      _
    $region35: #{distillation_text_loss.1} parent=1 // pred_check_branch
      %67 = sbr.rel (0) target = $region37
    $region36: #{distillation_text_loss.1} parent=1 // pred_region
      %68 = dma.done [#allocation8], 128
    $region37: #{distillation_text_loss.1} parent=1 // pred_fallthru
      _
    %v69 = vld [vmem:[#allocation2] sm:$0xff]
    %v70 = vld [vmem:[#allocation2 + $0x8] sm:$0xf]
    %v73 = vcombine.high %v69, %v69
    %v75 = vunpack.c.l.s4 1983009808
    %v76 = vunpack.c.0.s8 %v75
    %v77 = vlaneseq
    %v78 = vshrl.u32 %v77, 7
    %v79 = vsub.s32 %v76, %v78
    %v80 = vrot.slane %v69, %v79
    %v82 = vunpack.c.l.s4 1983009808
    %v83 = vunpack.c.0.s8 %v82
    %v84 = vlaneseq
    %v85 = vshrl.u32 %v84, 7
    %v86 = vsub.s32 %v83, %v85
    %v87 = vrot.slane %v73, %v86
    %v88 = vcombine.high %v80, %v80
    %v89 = vcombine.high %v87, %v87
    %v91 = vunpack.c.l.s4 1983009808
    %v92 = vunpack.c.0.s8 %v91
    %v93 = vlaneseq
    %v94 = vshrl.u32 %v93, 7
    %v95 = vsub.s32 %v92, %v94
    %v96 = vrot.slane %v70, %v95
    %v97 = vcombine.high %v96, %v96
    %v104 = vpack.c.bf16 %v80, %v80
    %v105 = vpack.c.bf16 %v88, %v88
    %v106 = vpack.c.bf16 %v87, %v87
    %v107 = vpack.c.bf16 %v89, %v89
    %v108 = vpack.c.bf16 %v96, %v96
    %v109 = vpack.c.bf16 %v97, %v97
    %v110 = vld [vmem:[#allocation4] sm:$0xff]
    %v111 = vld [vmem:[#allocation4 + $0x8] sm:$0xff]
    %v112 = vld [vmem:[#allocation4 + $0x10] sm:$0xff]
    %v113 = vld [vmem:[#allocation4 + $0x18] sm:$0xff]
    %v114 = vld [vmem:[#allocation4 + $0x20] sm:$0xff]
    %v115 = vld [vmem:[#allocation4 + $0x28] sm:$0xff]
    %v116 = vld [vmem:[#allocation4 + $0x30] sm:$0xff]
    %v117 = vld [vmem:[#allocation4 + $0x38] sm:$0xff]
    %v118 = vld [vmem:[#allocation4 + $0x40] sm:$0xff]
    %v119 = vld [vmem:[#allocation4 + $0x48] sm:$0xff]
    %v120 = vld [vmem:[#allocation4 + $0x50] sm:$0xff]
    %v121 = vld [vmem:[#allocation4 + $0x58] sm:$0xff]
    %v122 = vld [vmem:[#allocation4 + $0x60] sm:$0xff]
    %v123 = vld [vmem:[#allocation4 + $0x68] sm:$0xff]
    %v124 = vld [vmem:[#allocation4 + $0x70] sm:$0xff]
    %v125 = vld [vmem:[#allocation4 + $0x78] sm:$0xff]
    %v126 = vld [vmem:[#allocation4 + $0x80] sm:$0xff]
    %v127 = vld [vmem:[#allocation4 + $0x88] sm:$0xff]
    %v128 = vld [vmem:[#allocation4 + $0x90] sm:$0xff]
    %v129 = vld [vmem:[#allocation4 + $0x98] sm:$0xff]
    %v130 = vld [vmem:[#allocation4 + $0xa0] sm:$0xff]
    %v131 = vld [vmem:[#allocation4 + $0xa8] sm:$0xff]
    %v132 = vld [vmem:[#allocation4 + $0xb0] sm:$0xff]
    %v133 = vld [vmem:[#allocation4 + $0xb8] sm:$0xff]
    %v134 = vld [vmem:[#allocation4 + $0xc0] sm:$0xff]
    %v135 = vld [vmem:[#allocation4 + $0xc8] sm:$0xff]
    %v136 = vld [vmem:[#allocation4 + $0xd0] sm:$0xff]
    %v137 = vld [vmem:[#allocation4 + $0xd8] sm:$0xff]
    %v138 = vld [vmem:[#allocation4 + $0xe0] sm:$0xff]
    %v139 = vld [vmem:[#allocation4 + $0xe8] sm:$0xff]
    %v140 = vld [vmem:[#allocation4 + $0xf0] sm:$0xff]
    %v141 = vld [vmem:[#allocation4 + $0xf8] sm:$0xff]
    %v142 = vld [vmem:[#allocation4 + $0x100] sm:$0xff]
    %v143 = vld [vmem:[#allocation4 + $0x108] sm:$0xff]
    %v144 = vld [vmem:[#allocation4 + $0x110] sm:$0xff]
    %v145 = vld [vmem:[#allocation4 + $0x118] sm:$0xff]
    %v146 = vld [vmem:[#allocation4 + $0x120] sm:$0xff]
    %v147 = vld [vmem:[#allocation4 + $0x128] sm:$0xff]
    %v148 = vld [vmem:[#allocation4 + $0x130] sm:$0xff]
    %v149 = vld [vmem:[#allocation4 + $0x138] sm:$0xff]
    %v150 = vld [vmem:[#allocation4 + $0x140] sm:$0xff]
    %v151 = vld [vmem:[#allocation4 + $0x148] sm:$0xff]
    %v152 = vld [vmem:[#allocation4 + $0x150] sm:$0xff]
    %v153 = vld [vmem:[#allocation4 + $0x158] sm:$0xff]
    %v154 = vld [vmem:[#allocation4 + $0x160] sm:$0xff]
    %v155 = vld [vmem:[#allocation4 + $0x168] sm:$0xff]
    %v156 = vld [vmem:[#allocation4 + $0x170] sm:$0xff]
    %v157 = vld [vmem:[#allocation4 + $0x178] sm:$0xff]
    %v158 = vld [vmem:[#allocation4 + $0x180] sm:$0xff]
    %v159 = vld [vmem:[#allocation4 + $0x188] sm:$0xff]
    %v160 = vld [vmem:[#allocation4 + $0x190] sm:$0xff]
    %v161 = vld [vmem:[#allocation4 + $0x198] sm:$0xff]
    %v162 = vld [vmem:[#allocation4 + $0x1a0] sm:$0xff]
    %v163 = vld [vmem:[#allocation4 + $0x1a8] sm:$0xff]
    %v164 = vld [vmem:[#allocation4 + $0x1b0] sm:$0xff]
    %v165 = vld [vmem:[#allocation4 + $0x1b8] sm:$0xff]
    %v166 = vld [vmem:[#allocation4 + $0x1c0] sm:$0xff]
    %v167 = vld [vmem:[#allocation4 + $0x1c8] sm:$0xff]
    %v168 = vld [vmem:[#allocation4 + $0x1d0] sm:$0xff]
    %v169 = vld [vmem:[#allocation4 + $0x1d8] sm:$0xff]
    %v170 = vld [vmem:[#allocation4 + $0x1e0] sm:$0xff]
    %v171 = vld [vmem:[#allocation4 + $0x1e8] sm:$0xff]
    %v172 = vld [vmem:[#allocation4 + $0x1f0] sm:$0xff]
    %v173 = vld [vmem:[#allocation4 + $0x1f8] sm:$0xff]
    %v174 = vld [vmem:[#allocation4 + $0x200] sm:$0xff]
    %v175 = vld [vmem:[#allocation4 + $0x208] sm:$0xff]
    %v176 = vld [vmem:[#allocation4 + $0x210] sm:$0xff]
    %v177 = vld [vmem:[#allocation4 + $0x218] sm:$0xff]
    %v178 = vld [vmem:[#allocation4 + $0x220] sm:$0xff]
    %v179 = vld [vmem:[#allocation4 + $0x228] sm:$0xff]
    %v180 = vld [vmem:[#allocation4 + $0x230] sm:$0xff]
    %v181 = vld [vmem:[#allocation4 + $0x238] sm:$0xff]
    %v182 = vld [vmem:[#allocation4 + $0x240] sm:$0xff]
    %v183 = vld [vmem:[#allocation4 + $0x248] sm:$0xff]
    %v184 = vld [vmem:[#allocation4 + $0x250] sm:$0xff]
    %v185 = vld [vmem:[#allocation4 + $0x258] sm:$0xff]
    %v186 = vld [vmem:[#allocation4 + $0x260] sm:$0xff]
    %v187 = vld [vmem:[#allocation4 + $0x268] sm:$0xff]
    %v188 = vld [vmem:[#allocation4 + $0x270] sm:$0xff]
    %v189 = vld [vmem:[#allocation4 + $0x278] sm:$0xff]
    %v190 = vld [vmem:[#allocation4 + $0x280] sm:$0xff]
    %v191 = vld [vmem:[#allocation4 + $0x288] sm:$0xff]
    %v192 = vld [vmem:[#allocation4 + $0x290] sm:$0xff]
    %v193 = vld [vmem:[#allocation4 + $0x298] sm:$0xff]
    %v194 = vld [vmem:[#allocation4 + $0x2a0] sm:$0xff]
    %v195 = vld [vmem:[#allocation4 + $0x2a8] sm:$0xff]
    %v196 = vld [vmem:[#allocation4 + $0x2b0] sm:$0xff]
    %v197 = vld [vmem:[#allocation4 + $0x2b8] sm:$0xff]
    %v198 = vld [vmem:[#allocation4 + $0x2c0] sm:$0xff]
    %v199 = vld [vmem:[#allocation4 + $0x2c8] sm:$0xff]
    %v200 = vld [vmem:[#allocation4 + $0x2d0] sm:$0xff]
    %v201 = vld [vmem:[#allocation4 + $0x2d8] sm:$0xff]
    %v202 = vld [vmem:[#allocation4 + $0x2e0] sm:$0xff]
    %v203 = vld [vmem:[#allocation4 + $0x2e8] sm:$0xff]
    %v204 = vld [vmem:[#allocation4 + $0x2f0] sm:$0xff]
    %v205 = vld [vmem:[#allocation4 + $0x2f8] sm:$0xff]
    %v206 = vld [vmem:[#allocation4 + $0x300] sm:$0xff]
    %v207 = vld [vmem:[#allocation4 + $0x308] sm:$0xff]
    %v208 = vld [vmem:[#allocation4 + $0x310] sm:$0xff]
    %v209 = vld [vmem:[#allocation4 + $0x318] sm:$0xff]
    %v210 = vld [vmem:[#allocation4 + $0x320] sm:$0xff]
    %v211 = vld [vmem:[#allocation4 + $0x328] sm:$0xff]
    %v212 = vld [vmem:[#allocation4 + $0x330] sm:$0xff]
    %v213 = vld [vmem:[#allocation4 + $0x338] sm:$0xff]
    %v214 = vld [vmem:[#allocation4 + $0x340] sm:$0xff]
    %v215 = vld [vmem:[#allocation4 + $0x348] sm:$0xff]
    %v216 = vld [vmem:[#allocation4 + $0x350] sm:$0xff]
    %v217 = vld [vmem:[#allocation4 + $0x358] sm:$0xff]
    %v218 = vld [vmem:[#allocation4 + $0x360] sm:$0xff]
    %v219 = vld [vmem:[#allocation4 + $0x368] sm:$0xff]
    %v220 = vld [vmem:[#allocation4 + $0x370] sm:$0xff]
    %v221 = vld [vmem:[#allocation4 + $0x378] sm:$0xff]
    %v222 = vld [vmem:[#allocation4 + $0x380] sm:$0xff]
    %v223 = vld [vmem:[#allocation4 + $0x388] sm:$0xff]
    %v224 = vld [vmem:[#allocation4 + $0x390] sm:$0xff]
    %v225 = vld [vmem:[#allocation4 + $0x398] sm:$0xff]
    %v226 = vld [vmem:[#allocation4 + $0x3a0] sm:$0xff]
    %v227 = vld [vmem:[#allocation4 + $0x3a8] sm:$0xff]
    %v228 = vld [vmem:[#allocation4 + $0x3b0] sm:$0xff]
    %v229 = vld [vmem:[#allocation4 + $0x3b8] sm:$0xff]
    %v230 = vld [vmem:[#allocation4 + $0x3c0] sm:$0xff]
    %v231 = vld [vmem:[#allocation4 + $0x3c8] sm:$0xff]
    %v232 = vld [vmem:[#allocation4 + $0x3d0] sm:$0xff]
    %v233 = vld [vmem:[#allocation4 + $0x3d8] sm:$0xff]
    %v234 = vld [vmem:[#allocation4 + $0x3e0] sm:$0xff]
    %v235 = vld [vmem:[#allocation4 + $0x3e8] sm:$0xff]
    %v236 = vld [vmem:[#allocation4 + $0x3f0] sm:$0xff]
    %v237 = vld [vmem:[#allocation4 + $0x3f8] sm:$0xff]
    %v238 = vld [vmem:[#allocation4 + $0x400] sm:$0xff]
    %v239 = vld [vmem:[#allocation4 + $0x408] sm:$0xff]
    %v240 = vld [vmem:[#allocation4 + $0x410] sm:$0xff]
    %v241 = vld [vmem:[#allocation4 + $0x418] sm:$0xff]
    %v242 = vld [vmem:[#allocation4 + $0x420] sm:$0xff]
    %v243 = vld [vmem:[#allocation4 + $0x428] sm:$0xff]
    %v244 = vld [vmem:[#allocation4 + $0x430] sm:$0xff]
    %v245 = vld [vmem:[#allocation4 + $0x438] sm:$0xff]
    %v246 = vld [vmem:[#allocation4 + $0x440] sm:$0xff]
    %v247 = vld [vmem:[#allocation4 + $0x448] sm:$0xff]
    %v248 = vld [vmem:[#allocation4 + $0x450] sm:$0xff]
    %v249 = vld [vmem:[#allocation4 + $0x458] sm:$0xff]
    %v250 = vld [vmem:[#allocation4 + $0x460] sm:$0xff]
    %v251 = vld [vmem:[#allocation4 + $0x468] sm:$0xff]
    %v252 = vld [vmem:[#allocation4 + $0x470] sm:$0xff]
    %v253 = vld [vmem:[#allocation4 + $0x478] sm:$0xff]
    %v254 = vld [vmem:[#allocation4 + $0x480] sm:$0xff]
    %v255 = vld [vmem:[#allocation4 + $0x488] sm:$0xff]
    %v256 = vld [vmem:[#allocation4 + $0x490] sm:$0xff]
    %v257 = vld [vmem:[#allocation4 + $0x498] sm:$0xff]
    %v258 = vld [vmem:[#allocation4 + $0x4a0] sm:$0xff]
    %v259 = vld [vmem:[#allocation4 + $0x4a8] sm:$0xff]
    %v260 = vld [vmem:[#allocation4 + $0x4b0] sm:$0xff]
    %v261 = vld [vmem:[#allocation4 + $0x4b8] sm:$0xff]
    %v262 = vld [vmem:[#allocation4 + $0x4c0] sm:$0xff]
    %v263 = vld [vmem:[#allocation4 + $0x4c8] sm:$0xff]
    %v264 = vld [vmem:[#allocation4 + $0x4d0] sm:$0xff]
    %v265 = vld [vmem:[#allocation4 + $0x4d8] sm:$0xff]
    %v266 = vld [vmem:[#allocation4 + $0x4e0] sm:$0xff]
    %v267 = vld [vmem:[#allocation4 + $0x4e8] sm:$0xff]
    %v268 = vld [vmem:[#allocation4 + $0x4f0] sm:$0xff]
    %v269 = vld [vmem:[#allocation4 + $0x4f8] sm:$0xff]
    %v270 = vld [vmem:[#allocation4 + $0x500] sm:$0xff]
    %v271 = vld [vmem:[#allocation4 + $0x508] sm:$0xff]
    %v272 = vld [vmem:[#allocation4 + $0x510] sm:$0xff]
    %v273 = vld [vmem:[#allocation4 + $0x518] sm:$0xff]
    %v274 = vld [vmem:[#allocation4 + $0x520] sm:$0xff]
    %v275 = vld [vmem:[#allocation4 + $0x528] sm:$0xff]
    %v276 = vld [vmem:[#allocation4 + $0x530] sm:$0xff]
    %v277 = vld [vmem:[#allocation4 + $0x538] sm:$0xff]
    %v278 = vld [vmem:[#allocation4 + $0x540] sm:$0xff]
    %v279 = vld [vmem:[#allocation4 + $0x548] sm:$0xff]
    %v280 = vld [vmem:[#allocation4 + $0x550] sm:$0xff]
    %v281 = vld [vmem:[#allocation4 + $0x558] sm:$0xff]
    %v282 = vld [vmem:[#allocation4 + $0x560] sm:$0xff]
    %v283 = vld [vmem:[#allocation4 + $0x568] sm:$0xff]
    %v284 = vld [vmem:[#allocation4 + $0x570] sm:$0xff]
    %v285 = vld [vmem:[#allocation4 + $0x578] sm:$0xff]
    %v286 = vld [vmem:[#allocation4 + $0x580] sm:$0xff]
    %v287 = vld [vmem:[#allocation4 + $0x588] sm:$0xff]
    %v288 = vld [vmem:[#allocation4 + $0x590] sm:$0xff]
    %v289 = vld [vmem:[#allocation4 + $0x598] sm:$0xff]
    %v290 = vld [vmem:[#allocation4 + $0x5a0] sm:$0xff]
    %v291 = vld [vmem:[#allocation4 + $0x5a8] sm:$0xff]
    %v292 = vld [vmem:[#allocation4 + $0x5b0] sm:$0xff]
    %v293 = vld [vmem:[#allocation4 + $0x5b8] sm:$0xff]
    %v294 = vld [vmem:[#allocation4 + $0x5c0] sm:$0xff]
    %v295 = vld [vmem:[#allocation4 + $0x5c8] sm:$0xff]
    %v296 = vld [vmem:[#allocation4 + $0x5d0] sm:$0xff]
    %v297 = vld [vmem:[#allocation4 + $0x5d8] sm:$0xff]
    %v298 = vld [vmem:[#allocation4 + $0x5e0] sm:$0xff]
    %v299 = vld [vmem:[#allocation4 + $0x5e8] sm:$0xff]
    %v300 = vld [vmem:[#allocation4 + $0x5f0] sm:$0xff]
    %v301 = vld [vmem:[#allocation4 + $0x5f8] sm:$0xff]
    %v302 = vunpack.c.l.s8.bf16 %v110
    %v303 = vunpack.c.l.s8.bf16 %v111
    %v304 = vunpack.c.l.s8.bf16 %v112
    %v305 = vunpack.c.l.s8.bf16 %v113
    %v306 = vunpack.c.l.s8.bf16 %v114
    %v307 = vunpack.c.l.s8.bf16 %v115
    %v308 = vunpack.c.l.s8.bf16 %v116
    %v309 = vunpack.c.l.s8.bf16 %v117
    %v310 = vunpack.c.h.s8.bf16 %v110
    %v311 = vunpack.c.h.s8.bf16 %v111
    %v312 = vunpack.c.h.s8.bf16 %v112
    %v313 = vunpack.c.h.s8.bf16 %v113
    %v314 = vunpack.c.h.s8.bf16 %v114
    %v315 = vunpack.c.h.s8.bf16 %v115
    %v316 = vunpack.c.h.s8.bf16 %v116
    %v317 = vunpack.c.h.s8.bf16 %v117
    %v318 = vunpack.c.l.s8.bf16 %v118
    %v319 = vunpack.c.l.s8.bf16 %v119
    %v320 = vunpack.c.l.s8.bf16 %v120
    %v321 = vunpack.c.l.s8.bf16 %v121
    %v322 = vunpack.c.l.s8.bf16 %v122
    %v323 = vunpack.c.l.s8.bf16 %v123
    %v324 = vunpack.c.l.s8.bf16 %v124
    %v325 = vunpack.c.l.s8.bf16 %v125
    %v326 = vunpack.c.h.s8.bf16 %v118
    %v327 = vunpack.c.h.s8.bf16 %v119
    %v328 = vunpack.c.h.s8.bf16 %v120
    %v329 = vunpack.c.h.s8.bf16 %v121
    %v330 = vunpack.c.h.s8.bf16 %v122
    %v331 = vunpack.c.h.s8.bf16 %v123
    %v332 = vunpack.c.h.s8.bf16 %v124
    %v333 = vunpack.c.h.s8.bf16 %v125
    %v334 = vunpack.c.l.s8.bf16 %v126
    %v335 = vunpack.c.l.s8.bf16 %v127
    %v336 = vunpack.c.l.s8.bf16 %v128
    %v337 = vunpack.c.l.s8.bf16 %v129
    %v338 = vunpack.c.l.s8.bf16 %v130
    %v339 = vunpack.c.l.s8.bf16 %v131
    %v340 = vunpack.c.l.s8.bf16 %v132
    %v341 = vunpack.c.l.s8.bf16 %v133
    %v342 = vunpack.c.h.s8.bf16 %v126
    %v343 = vunpack.c.h.s8.bf16 %v127
    %v344 = vunpack.c.h.s8.bf16 %v128
    %v345 = vunpack.c.h.s8.bf16 %v129
    %v346 = vunpack.c.h.s8.bf16 %v130
    %v347 = vunpack.c.h.s8.bf16 %v131
    %v348 = vunpack.c.h.s8.bf16 %v132
    %v349 = vunpack.c.h.s8.bf16 %v133
    %v350 = vunpack.c.l.s8.bf16 %v134
    %v351 = vunpack.c.l.s8.bf16 %v135
    %v352 = vunpack.c.l.s8.bf16 %v136
    %v353 = vunpack.c.l.s8.bf16 %v137
    %v354 = vunpack.c.l.s8.bf16 %v138
    %v355 = vunpack.c.l.s8.bf16 %v139
    %v356 = vunpack.c.l.s8.bf16 %v140
    %v357 = vunpack.c.l.s8.bf16 %v141
    %v358 = vunpack.c.h.s8.bf16 %v134
    %v359 = vunpack.c.h.s8.bf16 %v135
    %v360 = vunpack.c.h.s8.bf16 %v136
    %v361 = vunpack.c.h.s8.bf16 %v137
    %v362 = vunpack.c.h.s8.bf16 %v138
    %v363 = vunpack.c.h.s8.bf16 %v139
    %v364 = vunpack.c.h.s8.bf16 %v140
    %v365 = vunpack.c.h.s8.bf16 %v141
    %v366 = vunpack.c.l.s8.bf16 %v142
    %v367 = vunpack.c.l.s8.bf16 %v143
    %v368 = vunpack.c.l.s8.bf16 %v144
    %v369 = vunpack.c.l.s8.bf16 %v145
    %v370 = vunpack.c.l.s8.bf16 %v146
    %v371 = vunpack.c.l.s8.bf16 %v147
    %v372 = vunpack.c.l.s8.bf16 %v148
    %v373 = vunpack.c.l.s8.bf16 %v149
    %v374 = vunpack.c.h.s8.bf16 %v142
    %v375 = vunpack.c.h.s8.bf16 %v143
    %v376 = vunpack.c.h.s8.bf16 %v144
    %v377 = vunpack.c.h.s8.bf16 %v145
    %v378 = vunpack.c.h.s8.bf16 %v146
    %v379 = vunpack.c.h.s8.bf16 %v147
    %v380 = vunpack.c.h.s8.bf16 %v148
    %v381 = vunpack.c.h.s8.bf16 %v149
    %v382 = vunpack.c.l.s8.bf16 %v150
    %v383 = vunpack.c.l.s8.bf16 %v151
    %v384 = vunpack.c.l.s8.bf16 %v152
    %v385 = vunpack.c.l.s8.bf16 %v153
    %v386 = vunpack.c.l.s8.bf16 %v154
    %v387 = vunpack.c.l.s8.bf16 %v155
    %v388 = vunpack.c.l.s8.bf16 %v156
    %v389 = vunpack.c.l.s8.bf16 %v157
    %v390 = vunpack.c.h.s8.bf16 %v150
    %v391 = vunpack.c.h.s8.bf16 %v151
    %v392 = vunpack.c.h.s8.bf16 %v152
    %v393 = vunpack.c.h.s8.bf16 %v153
    %v394 = vunpack.c.h.s8.bf16 %v154
    %v395 = vunpack.c.h.s8.bf16 %v155
    %v396 = vunpack.c.h.s8.bf16 %v156
    %v397 = vunpack.c.h.s8.bf16 %v157
    %v398 = vunpack.c.l.s8.bf16 %v158
    %v399 = vunpack.c.l.s8.bf16 %v159
    %v400 = vunpack.c.l.s8.bf16 %v160
    %v401 = vunpack.c.l.s8.bf16 %v161
    %v402 = vunpack.c.l.s8.bf16 %v162
    %v403 = vunpack.c.l.s8.bf16 %v163
    %v404 = vunpack.c.l.s8.bf16 %v164
    %v405 = vunpack.c.l.s8.bf16 %v165
    %v406 = vunpack.c.h.s8.bf16 %v158
    %v407 = vunpack.c.h.s8.bf16 %v159
    %v408 = vunpack.c.h.s8.bf16 %v160
    %v409 = vunpack.c.h.s8.bf16 %v161
    %v410 = vunpack.c.h.s8.bf16 %v162
    %v411 = vunpack.c.h.s8.bf16 %v163
    %v412 = vunpack.c.h.s8.bf16 %v164
    %v413 = vunpack.c.h.s8.bf16 %v165
    %v414 = vunpack.c.l.s8.bf16 %v166
    %v415 = vunpack.c.l.s8.bf16 %v167
    %v416 = vunpack.c.l.s8.bf16 %v168
    %v417 = vunpack.c.l.s8.bf16 %v169
    %v418 = vunpack.c.l.s8.bf16 %v170
    %v419 = vunpack.c.l.s8.bf16 %v171
    %v420 = vunpack.c.l.s8.bf16 %v172
    %v421 = vunpack.c.l.s8.bf16 %v173
    %v422 = vunpack.c.h.s8.bf16 %v166
    %v423 = vunpack.c.h.s8.bf16 %v167
    %v424 = vunpack.c.h.s8.bf16 %v168
    %v425 = vunpack.c.h.s8.bf16 %v169
    %v426 = vunpack.c.h.s8.bf16 %v170
    %v427 = vunpack.c.h.s8.bf16 %v171
    %v428 = vunpack.c.h.s8.bf16 %v172
    %v429 = vunpack.c.h.s8.bf16 %v173
    %v430 = vunpack.c.l.s8.bf16 %v174
    %v431 = vunpack.c.l.s8.bf16 %v175
    %v432 = vunpack.c.l.s8.bf16 %v176
    %v433 = vunpack.c.l.s8.bf16 %v177
    %v434 = vunpack.c.l.s8.bf16 %v178
    %v435 = vunpack.c.l.s8.bf16 %v179
    %v436 = vunpack.c.l.s8.bf16 %v180
    %v437 = vunpack.c.l.s8.bf16 %v181
    %v438 = vunpack.c.h.s8.bf16 %v174
    %v439 = vunpack.c.h.s8.bf16 %v175
    %v440 = vunpack.c.h.s8.bf16 %v176
    %v441 = vunpack.c.h.s8.bf16 %v177
    %v442 = vunpack.c.h.s8.bf16 %v178
    %v443 = vunpack.c.h.s8.bf16 %v179
    %v444 = vunpack.c.h.s8.bf16 %v180
    %v445 = vunpack.c.h.s8.bf16 %v181
    %v446 = vunpack.c.l.s8.bf16 %v182
    %v447 = vunpack.c.l.s8.bf16 %v183
    %v448 = vunpack.c.l.s8.bf16 %v184
    %v449 = vunpack.c.l.s8.bf16 %v185
    %v450 = vunpack.c.l.s8.bf16 %v186
    %v451 = vunpack.c.l.s8.bf16 %v187
    %v452 = vunpack.c.l.s8.bf16 %v188
    %v453 = vunpack.c.l.s8.bf16 %v189
    %v454 = vunpack.c.h.s8.bf16 %v182
    %v455 = vunpack.c.h.s8.bf16 %v183
    %v456 = vunpack.c.h.s8.bf16 %v184
    %v457 = vunpack.c.h.s8.bf16 %v185
    %v458 = vunpack.c.h.s8.bf16 %v186
    %v459 = vunpack.c.h.s8.bf16 %v187
    %v460 = vunpack.c.h.s8.bf16 %v188
    %v461 = vunpack.c.h.s8.bf16 %v189
    %v462 = vunpack.c.l.s8.bf16 %v190
    %v463 = vunpack.c.l.s8.bf16 %v191
    %v464 = vunpack.c.l.s8.bf16 %v192
    %v465 = vunpack.c.l.s8.bf16 %v193
    %v466 = vunpack.c.l.s8.bf16 %v194
    %v467 = vunpack.c.l.s8.bf16 %v195
    %v468 = vunpack.c.l.s8.bf16 %v196
    %v469 = vunpack.c.l.s8.bf16 %v197
    %v470 = vunpack.c.h.s8.bf16 %v190
    %v471 = vunpack.c.h.s8.bf16 %v191
    %v472 = vunpack.c.h.s8.bf16 %v192
    %v473 = vunpack.c.h.s8.bf16 %v193
    %v474 = vunpack.c.h.s8.bf16 %v194
    %v475 = vunpack.c.h.s8.bf16 %v195
    %v476 = vunpack.c.h.s8.bf16 %v196
    %v477 = vunpack.c.h.s8.bf16 %v197
    %v478 = vunpack.c.l.s8.bf16 %v198
    %v479 = vunpack.c.l.s8.bf16 %v199
    %v480 = vunpack.c.l.s8.bf16 %v200
    %v481 = vunpack.c.l.s8.bf16 %v201
    %v482 = vunpack.c.l.s8.bf16 %v202
    %v483 = vunpack.c.l.s8.bf16 %v203
    %v484 = vunpack.c.l.s8.bf16 %v204
    %v485 = vunpack.c.l.s8.bf16 %v205
    %v486 = vunpack.c.h.s8.bf16 %v198
    %v487 = vunpack.c.h.s8.bf16 %v199
    %v488 = vunpack.c.h.s8.bf16 %v200
    %v489 = vunpack.c.h.s8.bf16 %v201
    %v490 = vunpack.c.h.s8.bf16 %v202
    %v491 = vunpack.c.h.s8.bf16 %v203
    %v492 = vunpack.c.h.s8.bf16 %v204
    %v493 = vunpack.c.h.s8.bf16 %v205
    %v494 = vunpack.c.l.s8.bf16 %v206
    %v495 = vunpack.c.l.s8.bf16 %v207
    %v496 = vunpack.c.l.s8.bf16 %v208
    %v497 = vunpack.c.l.s8.bf16 %v209
    %v498 = vunpack.c.l.s8.bf16 %v210
    %v499 = vunpack.c.l.s8.bf16 %v211
    %v500 = vunpack.c.l.s8.bf16 %v212
    %v501 = vunpack.c.l.s8.bf16 %v213
    %v502 = vunpack.c.h.s8.bf16 %v206
    %v503 = vunpack.c.h.s8.bf16 %v207
    %v504 = vunpack.c.h.s8.bf16 %v208
    %v505 = vunpack.c.h.s8.bf16 %v209
    %v506 = vunpack.c.h.s8.bf16 %v210
    %v507 = vunpack.c.h.s8.bf16 %v211
    %v508 = vunpack.c.h.s8.bf16 %v212
    %v509 = vunpack.c.h.s8.bf16 %v213
    %v510 = vunpack.c.l.s8.bf16 %v214
    %v511 = vunpack.c.l.s8.bf16 %v215
    %v512 = vunpack.c.l.s8.bf16 %v216
    %v513 = vunpack.c.l.s8.bf16 %v217
    %v514 = vunpack.c.l.s8.bf16 %v218
    %v515 = vunpack.c.l.s8.bf16 %v219
    %v516 = vunpack.c.l.s8.bf16 %v220
    %v517 = vunpack.c.l.s8.bf16 %v221
    %v518 = vunpack.c.h.s8.bf16 %v214
    %v519 = vunpack.c.h.s8.bf16 %v215
    %v520 = vunpack.c.h.s8.bf16 %v216
    %v521 = vunpack.c.h.s8.bf16 %v217
    %v522 = vunpack.c.h.s8.bf16 %v218
    %v523 = vunpack.c.h.s8.bf16 %v219
    %v524 = vunpack.c.h.s8.bf16 %v220
    %v525 = vunpack.c.h.s8.bf16 %v221
    %v526 = vunpack.c.l.s8.bf16 %v222
    %v527 = vunpack.c.l.s8.bf16 %v223
    %v528 = vunpack.c.l.s8.bf16 %v224
    %v529 = vunpack.c.l.s8.bf16 %v225
    %v530 = vunpack.c.l.s8.bf16 %v226
    %v531 = vunpack.c.l.s8.bf16 %v227
    %v532 = vunpack.c.l.s8.bf16 %v228
    %v533 = vunpack.c.l.s8.bf16 %v229
    %v534 = vunpack.c.h.s8.bf16 %v222
    %v535 = vunpack.c.h.s8.bf16 %v223
    %v536 = vunpack.c.h.s8.bf16 %v224
    %v537 = vunpack.c.h.s8.bf16 %v225
    %v538 = vunpack.c.h.s8.bf16 %v226
    %v539 = vunpack.c.h.s8.bf16 %v227
    %v540 = vunpack.c.h.s8.bf16 %v228
    %v541 = vunpack.c.h.s8.bf16 %v229
    %v542 = vunpack.c.l.s8.bf16 %v230
    %v543 = vunpack.c.l.s8.bf16 %v231
    %v544 = vunpack.c.l.s8.bf16 %v232
    %v545 = vunpack.c.l.s8.bf16 %v233
    %v546 = vunpack.c.l.s8.bf16 %v234
    %v547 = vunpack.c.l.s8.bf16 %v235
    %v548 = vunpack.c.l.s8.bf16 %v236
    %v549 = vunpack.c.l.s8.bf16 %v237
    %v550 = vunpack.c.h.s8.bf16 %v230
    %v551 = vunpack.c.h.s8.bf16 %v231
    %v552 = vunpack.c.h.s8.bf16 %v232
    %v553 = vunpack.c.h.s8.bf16 %v233
    %v554 = vunpack.c.h.s8.bf16 %v234
    %v555 = vunpack.c.h.s8.bf16 %v235
    %v556 = vunpack.c.h.s8.bf16 %v236
    %v557 = vunpack.c.h.s8.bf16 %v237
    %v558 = vunpack.c.l.s8.bf16 %v238
    %v559 = vunpack.c.l.s8.bf16 %v239
    %v560 = vunpack.c.l.s8.bf16 %v240
    %v561 = vunpack.c.l.s8.bf16 %v241
    %v562 = vunpack.c.l.s8.bf16 %v242
    %v563 = vunpack.c.l.s8.bf16 %v243
    %v564 = vunpack.c.l.s8.bf16 %v244
    %v565 = vunpack.c.l.s8.bf16 %v245
    %v566 = vunpack.c.h.s8.bf16 %v238
    %v567 = vunpack.c.h.s8.bf16 %v239
    %v568 = vunpack.c.h.s8.bf16 %v240
    %v569 = vunpack.c.h.s8.bf16 %v241
    %v570 = vunpack.c.h.s8.bf16 %v242
    %v571 = vunpack.c.h.s8.bf16 %v243
    %v572 = vunpack.c.h.s8.bf16 %v244
    %v573 = vunpack.c.h.s8.bf16 %v245
    %v574 = vunpack.c.l.s8.bf16 %v246
    %v575 = vunpack.c.l.s8.bf16 %v247
    %v576 = vunpack.c.l.s8.bf16 %v248
    %v577 = vunpack.c.l.s8.bf16 %v249
    %v578 = vunpack.c.l.s8.bf16 %v250
    %v579 = vunpack.c.l.s8.bf16 %v251
    %v580 = vunpack.c.l.s8.bf16 %v252
    %v581 = vunpack.c.l.s8.bf16 %v253
    %v582 = vunpack.c.h.s8.bf16 %v246
    %v583 = vunpack.c.h.s8.bf16 %v247
    %v584 = vunpack.c.h.s8.bf16 %v248
    %v585 = vunpack.c.h.s8.bf16 %v249
    %v586 = vunpack.c.h.s8.bf16 %v250
    %v587 = vunpack.c.h.s8.bf16 %v251
    %v588 = vunpack.c.h.s8.bf16 %v252
    %v589 = vunpack.c.h.s8.bf16 %v253
    %v590 = vunpack.c.l.s8.bf16 %v254
    %v591 = vunpack.c.l.s8.bf16 %v255
    %v592 = vunpack.c.l.s8.bf16 %v256
    %v593 = vunpack.c.l.s8.bf16 %v257
    %v594 = vunpack.c.l.s8.bf16 %v258
    %v595 = vunpack.c.l.s8.bf16 %v259
    %v596 = vunpack.c.l.s8.bf16 %v260
    %v597 = vunpack.c.l.s8.bf16 %v261
    %v598 = vunpack.c.h.s8.bf16 %v254
    %v599 = vunpack.c.h.s8.bf16 %v255
    %v600 = vunpack.c.h.s8.bf16 %v256
    %v601 = vunpack.c.h.s8.bf16 %v257
    %v602 = vunpack.c.h.s8.bf16 %v258
    %v603 = vunpack.c.h.s8.bf16 %v259
    %v604 = vunpack.c.h.s8.bf16 %v260
    %v605 = vunpack.c.h.s8.bf16 %v261
    %v606 = vunpack.c.l.s8.bf16 %v262
    %v607 = vunpack.c.l.s8.bf16 %v263
    %v608 = vunpack.c.l.s8.bf16 %v264
    %v609 = vunpack.c.l.s8.bf16 %v265
    %v610 = vunpack.c.l.s8.bf16 %v266
    %v611 = vunpack.c.l.s8.bf16 %v267
    %v612 = vunpack.c.l.s8.bf16 %v268
    %v613 = vunpack.c.l.s8.bf16 %v269
    %v614 = vunpack.c.h.s8.bf16 %v262
    %v615 = vunpack.c.h.s8.bf16 %v263
    %v616 = vunpack.c.h.s8.bf16 %v264
    %v617 = vunpack.c.h.s8.bf16 %v265
    %v618 = vunpack.c.h.s8.bf16 %v266
    %v619 = vunpack.c.h.s8.bf16 %v267
    %v620 = vunpack.c.h.s8.bf16 %v268
    %v621 = vunpack.c.h.s8.bf16 %v269
    %v622 = vunpack.c.l.s8.bf16 %v270
    %v623 = vunpack.c.l.s8.bf16 %v271
    %v624 = vunpack.c.l.s8.bf16 %v272
    %v625 = vunpack.c.l.s8.bf16 %v273
    %v626 = vunpack.c.l.s8.bf16 %v274
    %v627 = vunpack.c.l.s8.bf16 %v275
    %v628 = vunpack.c.l.s8.bf16 %v276
    %v629 = vunpack.c.l.s8.bf16 %v277
    %v630 = vunpack.c.h.s8.bf16 %v270
    %v631 = vunpack.c.h.s8.bf16 %v271
    %v632 = vunpack.c.h.s8.bf16 %v272
    %v633 = vunpack.c.h.s8.bf16 %v273
    %v634 = vunpack.c.h.s8.bf16 %v274
    %v635 = vunpack.c.h.s8.bf16 %v275
    %v636 = vunpack.c.h.s8.bf16 %v276
    %v637 = vunpack.c.h.s8.bf16 %v277
    %v638 = vunpack.c.l.s8.bf16 %v278
    %v639 = vunpack.c.l.s8.bf16 %v279
    %v640 = vunpack.c.l.s8.bf16 %v280
    %v641 = vunpack.c.l.s8.bf16 %v281
    %v642 = vunpack.c.l.s8.bf16 %v282
    %v643 = vunpack.c.l.s8.bf16 %v283
    %v644 = vunpack.c.l.s8.bf16 %v284
    %v645 = vunpack.c.l.s8.bf16 %v285
    %v646 = vunpack.c.h.s8.bf16 %v278
    %v647 = vunpack.c.h.s8.bf16 %v279
    %v648 = vunpack.c.h.s8.bf16 %v280
    %v649 = vunpack.c.h.s8.bf16 %v281
    %v650 = vunpack.c.h.s8.bf16 %v282
    %v651 = vunpack.c.h.s8.bf16 %v283
    %v652 = vunpack.c.h.s8.bf16 %v284
    %v653 = vunpack.c.h.s8.bf16 %v285
    %v654 = vunpack.c.l.s8.bf16 %v286
    %v655 = vunpack.c.l.s8.bf16 %v287
    %v656 = vunpack.c.l.s8.bf16 %v288
    %v657 = vunpack.c.l.s8.bf16 %v289
    %v658 = vunpack.c.l.s8.bf16 %v290
    %v659 = vunpack.c.l.s8.bf16 %v291
    %v660 = vunpack.c.l.s8.bf16 %v292
    %v661 = vunpack.c.l.s8.bf16 %v293
    %v662 = vunpack.c.h.s8.bf16 %v286
    %v663 = vunpack.c.h.s8.bf16 %v287
    %v664 = vunpack.c.h.s8.bf16 %v288
    %v665 = vunpack.c.h.s8.bf16 %v289
    %v666 = vunpack.c.h.s8.bf16 %v290
    %v667 = vunpack.c.h.s8.bf16 %v291
    %v668 = vunpack.c.h.s8.bf16 %v292
    %v669 = vunpack.c.h.s8.bf16 %v293
    %v670 = vunpack.c.l.s8.bf16 %v294
    %v671 = vunpack.c.l.s8.bf16 %v295
    %v672 = vunpack.c.l.s8.bf16 %v296
    %v673 = vunpack.c.l.s8.bf16 %v297
    %v674 = vunpack.c.l.s8.bf16 %v298
    %v675 = vunpack.c.l.s8.bf16 %v299
    %v676 = vunpack.c.l.s8.bf16 %v300
    %v677 = vunpack.c.l.s8.bf16 %v301
    %v678 = vunpack.c.h.s8.bf16 %v294
    %v679 = vunpack.c.h.s8.bf16 %v295
    %v680 = vunpack.c.h.s8.bf16 %v296
    %v681 = vunpack.c.h.s8.bf16 %v297
    %v682 = vunpack.c.h.s8.bf16 %v298
    %v683 = vunpack.c.h.s8.bf16 %v299
    %v684 = vunpack.c.h.s8.bf16 %v300
    %v685 = vunpack.c.h.s8.bf16 %v301
    %686 = vmatprep.subr.bf16.mxu0 %v303
    %687 = vmatpush1.bf16.msra.mxu0 %v302
    %688 = vmatprep.subr.bf16.mxu0 %v311
    %689 = vmatpush1.bf16.msra.mxu0 %v310
    %690 = vmatprep.subr.bf16.mxu0 %v319
    %691 = vmatpush1.bf16.msra.mxu0 %v318
    %692 = vmatprep.subr.bf16.mxu0 %v327
    %693 = vmatpush1.bf16.msra.mxu0 %v326
    %694 = vmatprep.subr.bf16.mxu0 %v335
    %695 = vmatpush1.bf16.msra.mxu0 %v334
    %696 = vmatprep.subr.bf16.mxu0 %v343
    %697 = vmatpush1.bf16.msra.mxu0 %v342
    %698 = vmatprep.subr.bf16.mxu0 %v351
    %699 = vmatpush1.bf16.msra.mxu0 %v350
    %700 = vmatprep.subr.bf16.mxu0 %v359
    %701 = vmatpush1.bf16.msra.mxu0 %v358
    %702 = vmatprep.subr.bf16.mxu0 %v367
    %703 = vmatpush1.bf16.msra.mxu0 %v366
    %704 = vmatprep.subr.bf16.mxu0 %v375
    %705 = vmatpush1.bf16.msra.mxu0 %v374
    %706 = vmatprep.subr.bf16.mxu0 %v383
    %707 = vmatpush1.bf16.msra.mxu0 %v382
    %708 = vmatprep.subr.bf16.mxu0 %v391
    %709 = vmatpush1.bf16.msra.mxu0 %v390
    %710 = vmatprep.subr.bf16.mxu0 %v399
    %711 = vmatpush1.bf16.msra.mxu0 %v398
    %712 = vmatprep.subr.bf16.mxu0 %v407
    %713 = vmatpush1.bf16.msra.mxu0 %v406
    %714 = vmatprep.subr.bf16.mxu0 %v415
    %715 = vmatpush1.bf16.msra.mxu0 %v414
    %716 = vmatprep.subr.bf16.mxu0 %v423
    %717 = vmatpush1.bf16.msra.mxu0 %v422
    %718 = vmatprep.mubr.bf16.mxu0 %v105
    %719 = vmatmul.mubr.bf16.gmra.mrb[0].mxu0 %v104
    %v720 = vpop.f32.mrb[0].mxu0
    %v721 = vadd.f32 0.0, %v720
    %v722 = vpop.f32.mrb[0].mxu0
    %v723 = vadd.f32 0.0, %v722
    %v724 = vpop.f32.mrb[0].mxu0
    %v725 = vpop.f32.mrb[0].mxu0
    %726 = vdwg.mxu0
    %727 = vmatprep.subr.bf16.mxu0 %v431
    %728 = vmatpush1.bf16.msra.mxu0 %v430
    %729 = vmatprep.subr.bf16.mxu0 %v439
    %730 = vmatpush1.bf16.msra.mxu0 %v438
    %731 = vmatprep.subr.bf16.mxu0 %v447
    %732 = vmatpush1.bf16.msra.mxu0 %v446
    %733 = vmatprep.subr.bf16.mxu0 %v455
    %734 = vmatpush1.bf16.msra.mxu0 %v454
    %735 = vmatprep.subr.bf16.mxu0 %v463
    %736 = vmatpush1.bf16.msra.mxu0 %v462
    %737 = vmatprep.subr.bf16.mxu0 %v471
    %738 = vmatpush1.bf16.msra.mxu0 %v470
    %739 = vmatprep.subr.bf16.mxu0 %v479
    %740 = vmatpush1.bf16.msra.mxu0 %v478
    %741 = vmatprep.subr.bf16.mxu0 %v487
    %742 = vmatpush1.bf16.msra.mxu0 %v486
    %743 = vmatprep.subr.bf16.mxu0 %v495
    %744 = vmatpush1.bf16.msra.mxu0 %v494
    %745 = vmatprep.subr.bf16.mxu0 %v503
    %746 = vmatpush1.bf16.msra.mxu0 %v502
    %747 = vmatprep.subr.bf16.mxu0 %v511
    %748 = vmatpush1.bf16.msra.mxu0 %v510
    %749 = vmatprep.subr.bf16.mxu0 %v519
    %750 = vmatpush1.bf16.msra.mxu0 %v518
    %751 = vmatprep.subr.bf16.mxu0 %v527
    %752 = vmatpush1.bf16.msra.mxu0 %v526
    %753 = vmatprep.subr.bf16.mxu0 %v535
    %754 = vmatpush1.bf16.msra.mxu0 %v534
    %755 = vmatprep.subr.bf16.mxu0 %v543
    %756 = vmatpush1.bf16.msra.mxu0 %v542
    %757 = vmatprep.subr.bf16.mxu0 %v551
    %758 = vmatpush1.bf16.msra.mxu0 %v550
    %759 = vmatprep.mubr.bf16.mxu0 %v107
    %760 = vmatmul.mubr.bf16.gmra.mrb[0].mxu0 %v106
    %v761 = vpop.f32.mrb[0].mxu0
    %v762 = vadd.f32 %v721, %v761
    %v763 = vpop.f32.mrb[0].mxu0
    %v764 = vadd.f32 %v723, %v763
    %v765 = vpop.f32.mrb[0].mxu0
    %v766 = vpop.f32.mrb[0].mxu0
    %767 = vdwg.mxu0
    %768 = vmatprep.subr.bf16.mxu0 %v559
    %769 = vmatpush1.bf16.msra.mxu0 %v558
    %770 = vmatprep.subr.bf16.mxu0 %v567
    %771 = vmatpush1.bf16.msra.mxu0 %v566
    %772 = vmatprep.subr.bf16.mxu0 %v575
    %773 = vmatpush1.bf16.msra.mxu0 %v574
    %774 = vmatprep.subr.bf16.mxu0 %v583
    %775 = vmatpush1.bf16.msra.mxu0 %v582
    %776 = vmatprep.subr.bf16.mxu0 %v591
    %777 = vmatpush1.bf16.msra.mxu0 %v590
    %778 = vmatprep.subr.bf16.mxu0 %v599
    %779 = vmatpush1.bf16.msra.mxu0 %v598
    %780 = vmatprep.subr.bf16.mxu0 %v607
    %781 = vmatpush1.bf16.msra.mxu0 %v606
    %782 = vmatprep.subr.bf16.mxu0 %v615
    %783 = vmatpush1.bf16.msra.mxu0 %v614
    %784 = vmatprep.subr.bf16.mxu0 %v623
    %785 = vmatpush1.bf16.msra.mxu0 %v622
    %786 = vmatprep.subr.bf16.mxu0 %v631
    %787 = vmatpush1.bf16.msra.mxu0 %v630
    %788 = vmatprep.subr.bf16.mxu0 %v639
    %789 = vmatpush1.bf16.msra.mxu0 %v638
    %790 = vmatprep.subr.bf16.mxu0 %v647
    %791 = vmatpush1.bf16.msra.mxu0 %v646
    %792 = vmatprep.subr.bf16.mxu0 %v655
    %793 = vmatpush1.bf16.msra.mxu0 %v654
    %794 = vmatprep.subr.bf16.mxu0 %v663
    %795 = vmatpush1.bf16.msra.mxu0 %v662
    %796 = vmatprep.subr.bf16.mxu0 %v671
    %797 = vmatpush1.bf16.msra.mxu0 %v670
    %798 = vmatprep.subr.bf16.mxu0 %v679
    %799 = vmatpush1.bf16.msra.mxu0 %v678
    %800 = vmatprep.mubr.bf16.mxu0 %v109
    %801 = vmatmul.mubr.bf16.gmra.mrb[0].mxu0 %v108
    %v802 = vpop.f32.mrb[0].mxu0
    %v803 = vadd.f32 %v762, %v802
    %v804 = vpop.f32.mrb[0].mxu0
    %v805 = vadd.f32 %v764, %v804
    %v806 = vpop.f32.mrb[0].mxu0
    %v807 = vpop.f32.mrb[0].mxu0
    %808 = vdwg.mxu0
    %809 = vmatprep.subr.bf16.mxu0 %v305
    %810 = vmatpush1.bf16.msra.mxu0 %v304
    %811 = vmatprep.subr.bf16.mxu0 %v313
    %812 = vmatpush1.bf16.msra.mxu0 %v312
    %813 = vmatprep.subr.bf16.mxu0 %v321
    %814 = vmatpush1.bf16.msra.mxu0 %v320
    %815 = vmatprep.subr.bf16.mxu0 %v329
    %816 = vmatpush1.bf16.msra.mxu0 %v328
    %817 = vmatprep.subr.bf16.mxu0 %v337
    %818 = vmatpush1.bf16.msra.mxu0 %v336
    %819 = vmatprep.subr.bf16.mxu0 %v345
    %820 = vmatpush1.bf16.msra.mxu0 %v344
    %821 = vmatprep.subr.bf16.mxu0 %v353
    %822 = vmatpush1.bf16.msra.mxu0 %v352
    %823 = vmatprep.subr.bf16.mxu0 %v361
    %824 = vmatpush1.bf16.msra.mxu0 %v360
    %825 = vmatprep.subr.bf16.mxu0 %v369
    %826 = vmatpush1.bf16.msra.mxu0 %v368
    %827 = vmatprep.subr.bf16.mxu0 %v377
    %828 = vmatpush1.bf16.msra.mxu0 %v376
    %829 = vmatprep.subr.bf16.mxu0 %v385
    %830 = vmatpush1.bf16.msra.mxu0 %v384
    %831 = vmatprep.subr.bf16.mxu0 %v393
    %832 = vmatpush1.bf16.msra.mxu0 %v392
    %833 = vmatprep.subr.bf16.mxu0 %v401
    %834 = vmatpush1.bf16.msra.mxu0 %v400
    %835 = vmatprep.subr.bf16.mxu0 %v409
    %836 = vmatpush1.bf16.msra.mxu0 %v408
    %837 = vmatprep.subr.bf16.mxu0 %v417
    %838 = vmatpush1.bf16.msra.mxu0 %v416
    %839 = vmatprep.subr.bf16.mxu0 %v425
    %840 = vmatpush1.bf16.msra.mxu0 %v424
    %841 = vmatprep.mubr.bf16.mxu0 %v105
    %842 = vmatmul.mubr.bf16.gmra.mrb[0].mxu0 %v104
    %v843 = vpop.f32.mrb[0].mxu0
    %v844 = vadd.f32 0.0, %v843
    %v845 = vpop.f32.mrb[0].mxu0
    %v846 = vadd.f32 0.0, %v845
    %v847 = vpop.f32.mrb[0].mxu0
    %v848 = vpop.f32.mrb[0].mxu0
    %849 = vdwg.mxu0
    %850 = vmatprep.subr.bf16.mxu0 %v433
    %851 = vmatpush1.bf16.msra.mxu0 %v432
    %852 = vmatprep.subr.bf16.mxu0 %v441
    %853 = vmatpush1.bf16.msra.mxu0 %v440
    %854 = vmatprep.subr.bf16.mxu0 %v449
    %855 = vmatpush1.bf16.msra.mxu0 %v448
    %856 = vmatprep.subr.bf16.mxu0 %v457
    %857 = vmatpush1.bf16.msra.mxu0 %v456
    %858 = vmatprep.subr.bf16.mxu0 %v465
    %859 = vmatpush1.bf16.msra.mxu0 %v464
    %860 = vmatprep.subr.bf16.mxu0 %v473
    %861 = vmatpush1.bf16.msra.mxu0 %v472
    %862 = vmatprep.subr.bf16.mxu0 %v481
    %863 = vmatpush1.bf16.msra.mxu0 %v480
    %864 = vmatprep.subr.bf16.mxu0 %v489
    %865 = vmatpush1.bf16.msra.mxu0 %v488
    %866 = vmatprep.subr.bf16.mxu0 %v497
    %867 = vmatpush1.bf16.msra.mxu0 %v496
    %868 = vmatprep.subr.bf16.mxu0 %v505
    %869 = vmatpush1.bf16.msra.mxu0 %v504
    %870 = vmatprep.subr.bf16.mxu0 %v513
    %871 = vmatpush1.bf16.msra.mxu0 %v512
    %872 = vmatprep.subr.bf16.mxu0 %v521
    %873 = vmatpush1.bf16.msra.mxu0 %v520
    %874 = vmatprep.subr.bf16.mxu0 %v529
    %875 = vmatpush1.bf16.msra.mxu0 %v528
    %876 = vmatprep.subr.bf16.mxu0 %v537
    %877 = vmatpush1.bf16.msra.mxu0 %v536
    %878 = vmatprep.subr.bf16.mxu0 %v545
    %879 = vmatpush1.bf16.msra.mxu0 %v544
    %880 = vmatprep.subr.bf16.mxu0 %v553
    %881 = vmatpush1.bf16.msra.mxu0 %v552
    %882 = vmatprep.mubr.bf16.mxu0 %v107
    %883 = vmatmul.mubr.bf16.gmra.mrb[0].mxu0 %v106
    %v884 = vpop.f32.mrb[0].mxu0
    %v885 = vadd.f32 %v844, %v884
    %v886 = vpop.f32.mrb[0].mxu0
    %v887 = vadd.f32 %v846, %v886
    %v888 = vpop.f32.mrb[0].mxu0
    %v889 = vpop.f32.mrb[0].mxu0
    %890 = vdwg.mxu0
    %891 = vmatprep.subr.bf16.mxu0 %v561
    %892 = vmatpush1.bf16.msra.mxu0 %v560
    %893 = vmatprep.subr.bf16.mxu0 %v569
    %894 = vmatpush1.bf16.msra.mxu0 %v568
    %895 = vmatprep.subr.bf16.mxu0 %v577
    %896 = vmatpush1.bf16.msra.mxu0 %v576
    %897 = vmatprep.subr.bf16.mxu0 %v585
    %898 = vmatpush1.bf16.msra.mxu0 %v584
    %899 = vmatprep.subr.bf16.mxu0 %v593
    %900 = vmatpush1.bf16.msra.mxu0 %v592
    %901 = vmatprep.subr.bf16.mxu0 %v601
    %902 = vmatpush1.bf16.msra.mxu0 %v600
    %903 = vmatprep.subr.bf16.mxu0 %v609
    %904 = vmatpush1.bf16.msra.mxu0 %v608
    %905 = vmatprep.subr.bf16.mxu0 %v617
    %906 = vmatpush1.bf16.msra.mxu0 %v616
    %907 = vmatprep.subr.bf16.mxu0 %v625
    %908 = vmatpush1.bf16.msra.mxu0 %v624
    %909 = vmatprep.subr.bf16.mxu0 %v633
    %910 = vmatpush1.bf16.msra.mxu0 %v632
    %911 = vmatprep.subr.bf16.mxu0 %v641
    %912 = vmatpush1.bf16.msra.mxu0 %v640
    %913 = vmatprep.subr.bf16.mxu0 %v649
    %914 = vmatpush1.bf16.msra.mxu0 %v648
    %915 = vmatprep.subr.bf16.mxu0 %v657
    %916 = vmatpush1.bf16.msra.mxu0 %v656
    %917 = vmatprep.subr.bf16.mxu0 %v665
    %918 = vmatpush1.bf16.msra.mxu0 %v664
    %919 = vmatprep.subr.bf16.mxu0 %v673
    %920 = vmatpush1.bf16.msra.mxu0 %v672
    %921 = vmatprep.subr.bf16.mxu0 %v681
    %922 = vmatpush1.bf16.msra.mxu0 %v680
    %923 = vmatprep.mubr.bf16.mxu0 %v109
    %924 = vmatmul.mubr.bf16.gmra.mrb[0].mxu0 %v108
    %v925 = vpop.f32.mrb[0].mxu0
    %v926 = vadd.f32 %v885, %v925
    %v927 = vpop.f32.mrb[0].mxu0
    %v928 = vadd.f32 %v887, %v927
    %v929 = vpop.f32.mrb[0].mxu0
    %v930 = vpop.f32.mrb[0].mxu0
    %931 = vdwg.mxu0
    %932 = vmatprep.subr.bf16.mxu0 %v307
    %933 = vmatpush1.bf16.msra.mxu0 %v306
    %934 = vmatprep.subr.bf16.mxu0 %v315
    %935 = vmatpush1.bf16.msra.mxu0 %v314
    %936 = vmatprep.subr.bf16.mxu0 %v323
    %937 = vmatpush1.bf16.msra.mxu0 %v322
    %938 = vmatprep.subr.bf16.mxu0 %v331
    %939 = vmatpush1.bf16.msra.mxu0 %v330
    %940 = vmatprep.subr.bf16.mxu0 %v339
    %941 = vmatpush1.bf16.msra.mxu0 %v338
    %942 = vmatprep.subr.bf16.mxu0 %v347
    %943 = vmatpush1.bf16.msra.mxu0 %v346
    %944 = vmatprep.subr.bf16.mxu0 %v355
    %945 = vmatpush1.bf16.msra.mxu0 %v354
    %946 = vmatprep.subr.bf16.mxu0 %v363
    %947 = vmatpush1.bf16.msra.mxu0 %v362
    %948 = vmatprep.subr.bf16.mxu0 %v371
    %949 = vmatpush1.bf16.msra.mxu0 %v370
    %950 = vmatprep.subr.bf16.mxu0 %v379
    %951 = vmatpush1.bf16.msra.mxu0 %v378
    %952 = vmatprep.subr.bf16.mxu0 %v387
    %953 = vmatpush1.bf16.msra.mxu0 %v386
    %954 = vmatprep.subr.bf16.mxu0 %v395
    %955 = vmatpush1.bf16.msra.mxu0 %v394
    %956 = vmatprep.subr.bf16.mxu0 %v403
    %957 = vmatpush1.bf16.msra.mxu0 %v402
    %958 = vmatprep.subr.bf16.mxu0 %v411
    %959 = vmatpush1.bf16.msra.mxu0 %v410
    %960 = vmatprep.subr.bf16.mxu0 %v419
    %961 = vmatpush1.bf16.msra.mxu0 %v418
    %962 = vmatprep.subr.bf16.mxu0 %v427
    %963 = vmatpush1.bf16.msra.mxu0 %v426
    %964 = vmatprep.mubr.bf16.mxu0 %v105
    %965 = vmatmul.mubr.bf16.gmra.mrb[0].mxu0 %v104
    %v966 = vpop.f32.mrb[0].mxu0
    %v967 = vadd.f32 0.0, %v966
    %v968 = vpop.f32.mrb[0].mxu0
    %v969 = vadd.f32 0.0, %v968
    %v970 = vpop.f32.mrb[0].mxu0
    %v971 = vpop.f32.mrb[0].mxu0
    %972 = vdwg.mxu0
    %973 = vmatprep.subr.bf16.mxu0 %v435
    %974 = vmatpush1.bf16.msra.mxu0 %v434
    %975 = vmatprep.subr.bf16.mxu0 %v443
    %976 = vmatpush1.bf16.msra.mxu0 %v442
    %977 = vmatprep.subr.bf16.mxu0 %v451
    %978 = vmatpush1.bf16.msra.mxu0 %v450
    %979 = vmatprep.subr.bf16.mxu0 %v459
    %980 = vmatpush1.bf16.msra.mxu0 %v458
    %981 = vmatprep.subr.bf16.mxu0 %v467
    %982 = vmatpush1.bf16.msra.mxu0 %v466
    %983 = vmatprep.subr.bf16.mxu0 %v475
    %984 = vmatpush1.bf16.msra.mxu0 %v474
    %985 = vmatprep.subr.bf16.mxu0 %v483
    %986 = vmatpush1.bf16.msra.mxu0 %v482
    %987 = vmatprep.subr.bf16.mxu0 %v491
    %988 = vmatpush1.bf16.msra.mxu0 %v490
    %989 = vmatprep.subr.bf16.mxu0 %v499
    %990 = vmatpush1.bf16.msra.mxu0 %v498
    %991 = vmatprep.subr.bf16.mxu0 %v507
    %992 = vmatpush1.bf16.msra.mxu0 %v506
    %993 = vmatprep.subr.bf16.mxu0 %v515
    %994 = vmatpush1.bf16.msra.mxu0 %v514
    %995 = vmatprep.subr.bf16.mxu0 %v523
    %996 = vmatpush1.bf16.msra.mxu0 %v522
    %997 = vmatprep.subr.bf16.mxu0 %v531
    %998 = vmatpush1.bf16.msra.mxu0 %v530
    %999 = vmatprep.subr.bf16.mxu0 %v539
    %1000 = vmatpush1.bf16.msra.mxu0 %v538
    %1001 = vmatprep.subr.bf16.mxu0 %v547
    %1002 = vmatpush1.bf16.msra.mxu0 %v546
    %1003 = vmatprep.subr.bf16.mxu0 %v555
    %1004 = vmatpush1.bf16.msra.mxu0 %v554
    %1005 = vmatprep.mubr.bf16.mxu0 %v107
    %1006 = vmatmul.mubr.bf16.gmra.mrb[0].mxu0 %v106
    %v1007 = vpop.f32.mrb[0].mxu0
    %v1008 = vadd.f32 %v967, %v1007
    %v1009 = vpop.f32.mrb[0].mxu0
    %v1010 = vadd.f32 %v969, %v1009
    %v1011 = vpop.f32.mrb[0].mxu0
    %v1012 = vpop.f32.mrb[0].mxu0
    %1013 = vdwg.mxu0
    %1014 = vmatprep.subr.bf16.mxu0 %v563
    %1015 = vmatpush1.bf16.msra.mxu0 %v562
    %1016 = vmatprep.subr.bf16.mxu0 %v571
    %1017 = vmatpush1.bf16.msra.mxu0 %v570
    %1018 = vmatprep.subr.bf16.mxu0 %v579
    %1019 = vmatpush1.bf16.msra.mxu0 %v578
    %1020 = vmatprep.subr.bf16.mxu0 %v587
    %1021 = vmatpush1.bf16.msra.mxu0 %v586
    %1022 = vmatprep.subr.bf16.mxu0 %v595
    %1023 = vmatpush1.bf16.msra.mxu0 %v594
    %1024 = vmatprep.subr.bf16.mxu0 %v603
    %1025 = vmatpush1.bf16.msra.mxu0 %v602
    %1026 = vmatprep.subr.bf16.mxu0 %v611
    %1027 = vmatpush1.bf16.msra.mxu0 %v610
    %1028 = vmatprep.subr.bf16.mxu0 %v619
    %1029 = vmatpush1.bf16.msra.mxu0 %v618
    %1030 = vmatprep.subr.bf16.mxu0 %v627
    %1031 = vmatpush1.bf16.msra.mxu0 %v626
    %1032 = vmatprep.subr.bf16.mxu0 %v635
    %1033 = vmatpush1.bf16.msra.mxu0 %v634
    %1034 = vmatprep.subr.bf16.mxu0 %v643
    %1035 = vmatpush1.bf16.msra.mxu0 %v642
    %1036 = vmatprep.subr.bf16.mxu0 %v651
    %1037 = vmatpush1.bf16.msra.mxu0 %v650
    %1038 = vmatprep.subr.bf16.mxu0 %v659
    %1039 = vmatpush1.bf16.msra.mxu0 %v658
    %1040 = vmatprep.subr.bf16.mxu0 %v667
    %1041 = vmatpush1.bf16.msra.mxu0 %v666
    %1042 = vmatprep.subr.bf16.mxu0 %v675
    %1043 = vmatpush1.bf16.msra.mxu0 %v674
    %1044 = vmatprep.subr.bf16.mxu0 %v683
    %1045 = vmatpush1.bf16.msra.mxu0 %v682
    %1046 = vmatprep.mubr.bf16.mxu0 %v109
    %1047 = vmatmul.mubr.bf16.gmra.mrb[0].mxu0 %v108
    %v1048 = vpop.f32.mrb[0].mxu0
    %v1049 = vadd.f32 %v1008, %v1048
    %v1050 = vpop.f32.mrb[0].mxu0
    %v1051 = vadd.f32 %v1010, %v1050
    %v1052 = vpop.f32.mrb[0].mxu0
    %v1053 = vpop.f32.mrb[0].mxu0
    %1054 = vdwg.mxu0
    %1055 = vmatprep.subr.bf16.mxu0 %v309
    %1056 = vmatpush1.bf16.msra.mxu0 %v308
    %1057 = vmatprep.subr.bf16.mxu0 %v317
    %1058 = vmatpush1.bf16.msra.mxu0 %v316
    %1059 = vmatprep.subr.bf16.mxu0 %v325
    %1060 = vmatpush1.bf16.msra.mxu0 %v324
    %1061 = vmatprep.subr.bf16.mxu0 %v333
    %1062 = vmatpush1.bf16.msra.mxu0 %v332
    %1063 = vmatprep.subr.bf16.mxu0 %v341
    %1064 = vmatpush1.bf16.msra.mxu0 %v340
    %1065 = vmatprep.subr.bf16.mxu0 %v349
    %1066 = vmatpush1.bf16.msra.mxu0 %v348
    %1067 = vmatprep.subr.bf16.mxu0 %v357
    %1068 = vmatpush1.bf16.msra.mxu0 %v356
    %1069 = vmatprep.subr.bf16.mxu0 %v365
    %1070 = vmatpush1.bf16.msra.mxu0 %v364
    %1071 = vmatprep.subr.bf16.mxu0 %v373
    %1072 = vmatpush1.bf16.msra.mxu0 %v372
    %1073 = vmatprep.subr.bf16.mxu0 %v381
    %1074 = vmatpush1.bf16.msra.mxu0 %v380
    %1075 = vmatprep.subr.bf16.mxu0 %v389
    %1076 = vmatpush1.bf16.msra.mxu0 %v388
    %1077 = vmatprep.subr.bf16.mxu0 %v397
    %1078 = vmatpush1.bf16.msra.mxu0 %v396
    %1079 = vmatprep.subr.bf16.mxu0 %v405
    %1080 = vmatpush1.bf16.msra.mxu0 %v404
    %1081 = vmatprep.subr.bf16.mxu0 %v413
    %1082 = vmatpush1.bf16.msra.mxu0 %v412
    %1083 = vmatprep.subr.bf16.mxu0 %v421
    %1084 = vmatpush1.bf16.msra.mxu0 %v420
    %1085 = vmatprep.subr.bf16.mxu0 %v429
    %1086 = vmatpush1.bf16.msra.mxu0 %v428
    %1087 = vmatprep.mubr.bf16.mxu0 %v105
    %1088 = vmatmul.mubr.bf16.gmra.mrb[0].mxu0 %v104
    %v1089 = vpop.f32.mrb[0].mxu0
    %v1090 = vadd.f32 0.0, %v1089
    %v1091 = vpop.f32.mrb[0].mxu0
    %v1092 = vadd.f32 0.0, %v1091
    %v1093 = vpop.f32.mrb[0].mxu0
    %v1094 = vpop.f32.mrb[0].mxu0
    %1095 = vdwg.mxu0
    %1096 = vmatprep.subr.bf16.mxu0 %v437
    %1097 = vmatpush1.bf16.msra.mxu0 %v436
    %1098 = vmatprep.subr.bf16.mxu0 %v445
    %1099 = vmatpush1.bf16.msra.mxu0 %v444
    %1100 = vmatprep.subr.bf16.mxu0 %v453
    %1101 = vmatpush1.bf16.msra.mxu0 %v452
    %1102 = vmatprep.subr.bf16.mxu0 %v461
    %1103 = vmatpush1.bf16.msra.mxu0 %v460
    %1104 = vmatprep.subr.bf16.mxu0 %v469
    %1105 = vmatpush1.bf16.msra.mxu0 %v468
    %1106 = vmatprep.subr.bf16.mxu0 %v477
    %1107 = vmatpush1.bf16.msra.mxu0 %v476
    %1108 = vmatprep.subr.bf16.mxu0 %v485
    %1109 = vmatpush1.bf16.msra.mxu0 %v484
    %1110 = vmatprep.subr.bf16.mxu0 %v493
    %1111 = vmatpush1.bf16.msra.mxu0 %v492
    %1112 = vmatprep.subr.bf16.mxu0 %v501
    %1113 = vmatpush1.bf16.msra.mxu0 %v500
    %1114 = vmatprep.subr.bf16.mxu0 %v509
    %1115 = vmatpush1.bf16.msra.mxu0 %v508
    %1116 = vmatprep.subr.bf16.mxu0 %v517
    %1117 = vmatpush1.bf16.msra.mxu0 %v516
    %1118 = vmatprep.subr.bf16.mxu0 %v525
    %1119 = vmatpush1.bf16.msra.mxu0 %v524
    %1120 = vmatprep.subr.bf16.mxu0 %v533
    %1121 = vmatpush1.bf16.msra.mxu0 %v532
    %1122 = vmatprep.subr.bf16.mxu0 %v541
    %1123 = vmatpush1.bf16.msra.mxu0 %v540
    %1124 = vmatprep.subr.bf16.mxu0 %v549
    %1125 = vmatpush1.bf16.msra.mxu0 %v548
    %1126 = vmatprep.subr.bf16.mxu0 %v557
    %1127 = vmatpush1.bf16.msra.mxu0 %v556
    %1128 = vmatprep.mubr.bf16.mxu0 %v107
    %1129 = vmatmul.mubr.bf16.gmra.mrb[0].mxu0 %v106
    %v1130 = vpop.f32.mrb[0].mxu0
    %v1131 = vadd.f32 %v1090, %v1130
    %v1132 = vpop.f32.mrb[0].mxu0
    %v1133 = vadd.f32 %v1092, %v1132
    %v1134 = vpop.f32.mrb[0].mxu0
    %v1135 = vpop.f32.mrb[0].mxu0
    %1136 = vdwg.mxu0
    %1137 = vmatprep.subr.bf16.mxu0 %v565
    %1138 = vmatpush1.bf16.msra.mxu0 %v564
    %1139 = vmatprep.subr.bf16.mxu0 %v573
    %1140 = vmatpush1.bf16.msra.mxu0 %v572
    %1141 = vmatprep.subr.bf16.mxu0 %v581
    %1142 = vmatpush1.bf16.msra.mxu0 %v580
    %1143 = vmatprep.subr.bf16.mxu0 %v589
    %1144 = vmatpush1.bf16.msra.mxu0 %v588
    %1145 = vmatprep.subr.bf16.mxu0 %v597
    %1146 = vmatpush1.bf16.msra.mxu0 %v596
    %1147 = vmatprep.subr.bf16.mxu0 %v605
    %1148 = vmatpush1.bf16.msra.mxu0 %v604
    %1149 = vmatprep.subr.bf16.mxu0 %v613
    %1150 = vmatpush1.bf16.msra.mxu0 %v612
    %1151 = vmatprep.subr.bf16.mxu0 %v621
    %1152 = vmatpush1.bf16.msra.mxu0 %v620
    %1153 = vmatprep.subr.bf16.mxu0 %v629
    %1154 = vmatpush1.bf16.msra.mxu0 %v628
    %1155 = vmatprep.subr.bf16.mxu0 %v637
    %1156 = vmatpush1.bf16.msra.mxu0 %v636
    %1157 = vmatprep.subr.bf16.mxu0 %v645
    %1158 = vmatpush1.bf16.msra.mxu0 %v644
    %1159 = vmatprep.subr.bf16.mxu0 %v653
    %1160 = vmatpush1.bf16.msra.mxu0 %v652
    %1161 = vmatprep.subr.bf16.mxu0 %v661
    %1162 = vmatpush1.bf16.msra.mxu0 %v660
    %1163 = vmatprep.subr.bf16.mxu0 %v669
    %1164 = vmatpush1.bf16.msra.mxu0 %v668
    %1165 = vmatprep.subr.bf16.mxu0 %v677
    %1166 = vmatpush1.bf16.msra.mxu0 %v676
    %1167 = vmatprep.subr.bf16.mxu0 %v685
    %1168 = vmatpush1.bf16.msra.mxu0 %v684
    %1169 = vmatprep.mubr.bf16.mxu0 %v109
    %1170 = vmatmul.mubr.bf16.gmra.mrb[0].mxu0 %v108
    %v1171 = vpop.f32.mrb[0].mxu0
    %v1172 = vadd.f32 %v1131, %v1171
    %v1173 = vpop.f32.mrb[0].mxu0
    %v1174 = vadd.f32 %v1133, %v1173
    %v1175 = vpop.f32.mrb[0].mxu0
    %v1176 = vpop.f32.mrb[0].mxu0
    %1177 = vdwg.mxu0
    %v1178 = vld [vmem:[#allocation6] sm:$0xff]
    %v1180 = vlaneseq
    %v1181 = vshrl.u32 %v1180, 7
    %v1182 = vsub.s32 0, %v1181
    %v1183 = vrot.slane %v1178, %v1182
    %v1184 = vlaneseq
    %v1185 = vshrl.u32 %v1184, 7
    %v1186 = vsub.s32 1, %v1185
    %v1187 = vrot.slane %v1178, %v1186
    %v1188 = vlaneseq
    %v1189 = vshrl.u32 %v1188, 7
    %v1190 = vsub.s32 2, %v1189
    %v1191 = vrot.slane %v1178, %v1190
    %v1192 = vlaneseq
    %v1193 = vshrl.u32 %v1192, 7
    %v1194 = vsub.s32 3, %v1193
    %v1195 = vrot.slane %v1178, %v1194
    %v1196 = vlaneseq
    %v1197 = vshrl.u32 %v1196, 7
    %v1198 = vsub.s32 4, %v1197
    %v1199 = vrot.slane %v1178, %v1198
    %v1200 = vlaneseq
    %v1201 = vshrl.u32 %v1200, 7
    %v1202 = vsub.s32 5, %v1201
    %v1203 = vrot.slane %v1178, %v1202
    %v1204 = vlaneseq
    %v1205 = vshrl.u32 %v1204, 7
    %v1206 = vsub.s32 6, %v1205
    %v1207 = vrot.slane %v1178, %v1206
    %v1208 = vlaneseq
    %v1209 = vshrl.u32 %v1208, 7
    %v1210 = vsub.s32 7, %v1209
    %v1211 = vrot.slane %v1178, %v1210
    %v1220 = vmul.f32 %v803, %v1183
    %v1221 = vmul.f32 %v805, %v1187
    %v1222 = vmul.f32 %v926, %v1191
    %v1223 = vmul.f32 %v928, %v1195
    %v1224 = vmul.f32 %v1049, %v1199
    %v1225 = vmul.f32 %v1051, %v1203
    %v1226 = vmul.f32 %v1172, %v1207
    %v1227 = vmul.f32 %v1174, %v1211
    %v1228 = vld [vmem:[#allocation7] sm:$0xff]
    %v1230 = vlaneseq
    %v1231 = vshrl.u32 %v1230, 7
    %v1232 = vsub.s32 0, %v1231
    %v1233 = vrot.slane %v1228, %v1232
    %v1234 = vlaneseq
    %v1235 = vshrl.u32 %v1234, 7
    %v1236 = vsub.s32 1, %v1235
    %v1237 = vrot.slane %v1228, %v1236
    %v1238 = vlaneseq
    %v1239 = vshrl.u32 %v1238, 7
    %v1240 = vsub.s32 2, %v1239
    %v1241 = vrot.slane %v1228, %v1240
    %v1242 = vlaneseq
    %v1243 = vshrl.u32 %v1242, 7
    %v1244 = vsub.s32 3, %v1243
    %v1245 = vrot.slane %v1228, %v1244
    %v1246 = vlaneseq
    %v1247 = vshrl.u32 %v1246, 7
    %v1248 = vsub.s32 4, %v1247
    %v1249 = vrot.slane %v1228, %v1248
    %v1250 = vlaneseq
    %v1251 = vshrl.u32 %v1250, 7
    %v1252 = vsub.s32 5, %v1251
    %v1253 = vrot.slane %v1228, %v1252
    %v1254 = vlaneseq
    %v1255 = vshrl.u32 %v1254, 7
    %v1256 = vsub.s32 6, %v1255
    %v1257 = vrot.slane %v1228, %v1256
    %v1258 = vlaneseq
    %v1259 = vshrl.u32 %v1258, 7
    %v1260 = vsub.s32 7, %v1259
    %v1261 = vrot.slane %v1228, %v1260
    %v1270 = vadd.f32 %v1220, %v1233
    %v1271 = vadd.f32 %v1221, %v1237
    %v1272 = vadd.f32 %v1222, %v1241
    %v1273 = vadd.f32 %v1223, %v1245
    %v1274 = vadd.f32 %v1224, %v1249
    %v1275 = vadd.f32 %v1225, %v1253
    %v1276 = vadd.f32 %v1226, %v1257
    %v1277 = vadd.f32 %v1227, %v1261
    %v1278 = vld [vmem:[%s4] sm:$0xff]
    %v1279 = vld [vmem:[%s4 + $0x8] sm:$0xff]
    %v1282 = vcombine.high %v1278, %v1278
    %v1284 = vunpack.c.l.s4 1983009808
    %v1285 = vunpack.c.0.s8 %v1284
    %v1286 = vlaneseq
    %v1287 = vshrl.u32 %v1286, 7
    %v1288 = vsub.s32 %v1285, %v1287
    %v1289 = vrot.slane %v1278, %v1288
    %v1291 = vunpack.c.l.s4 1983009808
    %v1292 = vunpack.c.0.s8 %v1291
    %v1293 = vlaneseq
    %v1294 = vshrl.u32 %v1293, 7
    %v1295 = vsub.s32 %v1292, %v1294
    %v1296 = vrot.slane %v1282, %v1295
    %v1297 = vcombine.high %v1289, %v1289
    %v1298 = vcombine.high %v1296, %v1296
    %v1299 = vcombine.high %v1279, %v1279
    %v1301 = vunpack.c.l.s4 1983009808
    %v1302 = vunpack.c.0.s8 %v1301
    %v1303 = vlaneseq
    %v1304 = vshrl.u32 %v1303, 7
    %v1305 = vsub.s32 %v1302, %v1304
    %v1306 = vrot.slane %v1279, %v1305
    %v1308 = vunpack.c.l.s4 1983009808
    %v1309 = vunpack.c.0.s8 %v1308
    %v1310 = vlaneseq
    %v1311 = vshrl.u32 %v1310, 7
    %v1312 = vsub.s32 %v1309, %v1311
    %v1313 = vrot.slane %v1299, %v1312
    %v1314 = vcombine.high %v1306, %v1306
    %v1315 = vcombine.high %v1313, %v1313
    %v1324 = vsub.f32 %v1270, %v1289
    %v1325 = vsub.f32 %v1271, %v1297
    %v1326 = vsub.f32 %v1272, %v1296
    %v1327 = vsub.f32 %v1273, %v1298
    %v1328 = vsub.f32 %v1274, %v1306
    %v1329 = vsub.f32 %v1275, %v1314
    %v1330 = vsub.f32 %v1276, %v1313
    %v1331 = vsub.f32 %v1277, %v1315
    %v1332 = vmul.f32 %v1324, %v1324
    %v1333 = vmul.f32 %v1325, %v1325
    %v1334 = vmul.f32 %v1326, %v1326
    %v1335 = vmul.f32 %v1327, %v1327
    %v1336 = vmul.f32 %v1328, %v1328
    %v1337 = vmul.f32 %v1329, %v1329
    %v1338 = vmul.f32 %v1330, %v1330
    %v1339 = vmul.f32 %v1331, %v1331
    %vm1340 = vcmask 1041408
    %v1341 = vsel %vm1340, %v1332, 0.0
    %v1342 = vsel %vm1340, %v1333, 0.0
    %v1343 = vadd.f32 %v1341, %v1342
    %v1344 = vsel %vm1340, %v1334, 0.0
    %v1345 = vadd.f32 %v1343, %v1344
    %v1346 = vsel %vm1340, %v1335, 0.0
    %v1347 = vadd.f32 %v1345, %v1346
    %v1348 = vsel %vm1340, %v1336, 0.0
    %v1349 = vadd.f32 %v1347, %v1348
    %v1350 = vsel %vm1340, %v1337, 0.0
    %v1351 = vadd.f32 %v1349, %v1350
    %v1352 = vsel %vm1340, %v1338, 0.0
    %v1353 = vadd.f32 %v1351, %v1352
    %v1354 = vsel %vm1340, %v1339, 0.0
    %v1355 = vadd.f32 %v1353, %v1354
    %1356 = vadd.xlane.f32.xlu0 %v1355
    %v1357 = vpop.xlane.xlu0 %1356
    %v1358 = vrot.slane %v1357, 4
    %v1359 = vadd.f32 %v1357, %v1358
    %v1360 = vrot.slane %v1359, 2
    %v1361 = vadd.f32 %v1359, %v1360
    %v1362 = vrot.slane %v1361, 1
    %v1363 = vadd.f32 %v1361, %v1362
    %s1364 = vtos %v1363
    %s1365 = smul.f32 %s1364, 0.00048828125
    %v1366 = vstv %s1365
    %1367 = vst [vmem:[%s5] sm:$0xff] %v1366
    // Predicated region
    $region38: #{distillation_text_loss.1} parent=1 // pred_check
      _
    $region39: #{distillation_text_loss.1} parent=1 // pred_check_branch
      %1369 = sbr.rel (0) target = $region41
    $region40: #{distillation_text_loss.1} parent=1 // pred_region
      _
    $region41: #{distillation_text_loss.1} parent=1 // pred_fallthru
      _
    // Predicated region
    $region42: #{distillation_text_loss.1} parent=1 // pred_check
      _
    $region43: #{distillation_text_loss.1} parent=1 // pred_check_branch
      %1371 = sbr.rel (0) target = $region45
    $region44: #{distillation_text_loss.1} parent=1 // pred_region
      _
    $region45: #{distillation_text_loss.1} parent=1 // pred_fallthru
      _
    %1372 = vsyncpa [#allocation3], 1
    %1373 = vsyncpa [#allocation5], 1
    %1374 = vsyncpa [#allocation8], 1

</llo_original>
